<compile_context>
chip_gen: v6e
topology: v6e:2x2x1
jax: 0.10.0
libtpu: 0.0.40
codegen_flags: <defaults>
</compile_context>

<pallas_src>
import functools
import math

import jax
import jax.numpy as jnp
from jax import lax
from jax.experimental import pallas as pl
from jax.experimental.pallas import tpu as pltpu


def _mha_kernel(x_ref, wqkv_t_ref, wproj_t_ref, bproj_ref, o_ref,
                qkv_sc, ctx_sc, *, num_heads, head_dim, seq_len, block_b):
    """One grid step == `block_b` batch elements, fully fused:
       QKV projection -> per-(batch, head) causal attention -> output projection."""
    T = seq_len
    d_out = num_heads * head_dim

    # ---- fused QKV projection on the flattened (block_b*T, d_in) tile --------
    # Weights arrive pre-transposed and pre-cast to bf16: y = x @ W.T == x @ W_t.
    x = x_ref[...].astype(jnp.bfloat16)
    qkv_sc[...] = jnp.dot(x, wqkv_t_ref[...], preferred_element_type=jnp.float32)

    # ---- causal mask as an additive bias, built once per grid step -----------
    row = lax.broadcasted_iota(jnp.int32, (T, T), 0)
    col = lax.broadcasted_iota(jnp.int32, (T, T), 1)
    mask_bias = jnp.where(col > row, jnp.float32(-1e30), jnp.float32(0.0))
    # TODO(synk): for GPT-scale T, move (batch, head, q-tile) onto the grid with
    # a flash-style online-softmax KV loop and generate the bias per tile.

    # Reproduce the module's scaling bug: scores / hd**(-0.5) == scores * sqrt(hd).
    # Folded into q (T*hd multiply) instead of scaling the (T, T) scores.
    scale = jnp.float32(float(head_dim) ** 0.5)

    # ---- per (batch-in-block, head) attention with plain 2-D MXU dots --------
    for b in range(block_b):
        r0 = b * T
        for h in range(num_heads):
            c0 = h * head_dim
            q = qkv_sc[pl.ds(r0, T), pl.ds(0 * d_out + c0, head_dim)]
            k = qkv_sc[pl.ds(r0, T), pl.ds(1 * d_out + c0, head_dim)]
            v = qkv_sc[pl.ds(r0, T), pl.ds(2 * d_out + c0, head_dim)]

            q = (q * scale).astype(jnp.bfloat16)   # fold sqrt(hd) into q
            k = k.astype(jnp.bfloat16)
            v = v.astype(jnp.bfloat16)

            # scores[i, j] = q_i . k_j -- contract last dims of both operands
            # (no transpose materialized), f32 accumulation on the MXU.
            scores = lax.dot_general(q, k, (((1,), (1,)), ((), ())),
                                     preferred_element_type=jnp.float32)
            scores = scores + mask_bias            # single (T, T) VPU add

            # Numerically stable softmax in f32 (v5e has no bf16 VPU/EUP path).
            m = jnp.max(scores, axis=-1, keepdims=True)
            p = jnp.exp(scores - m)
            denom = jnp.sum(p, axis=-1, keepdims=True)

            # Unnormalized PV matmul, then rescale the (T, hd) result (EUP recip).
            ctx = jnp.dot(p.astype(jnp.bfloat16), v,
                          preferred_element_type=jnp.float32)
            ctx = ctx * pl.reciprocal(denom, approx=True)

            # Write this head's context straight into its column slice.
            ctx_sc[pl.ds(r0, T), pl.ds(c0, head_dim)] = ctx

    # ---- output projection (bf16 weight, f32 accumulation + f32 bias) --------
    out = jnp.dot(ctx_sc[...].astype(jnp.bfloat16), wproj_t_ref[...],
                  preferred_element_type=jnp.float32)
    out = out + bproj_ref[...]
    o_ref[...] = out.astype(o_ref.dtype)
    # TODO(synk): if the real d_out stays < 128, pack batch blocks along the
    # lane axis so the final store is lane-dense instead of masked at 32/128.


def _step_vmem_bytes(block_b, T, d_in, d_out):
    """Rough per-grid-step VMEM footprint (bytes) for a given block_b."""
    x_blk = 2 * block_b * T * d_in * 4            # pipelined (double-buffered) input
    out_blk = 2 * block_b * T * d_out * 4         # pipelined output
    qkv_sc = block_b * T * 3 * d_out * 4          # f32 scratch
    ctx_sc = block_b * T * d_out * 4              # f32 scratch
    weights = (d_in * 3 * d_out + d_out * d_out) * 2 + d_out * 4  # bf16, 1x buffered
    per_head = 3 * T * T * 4                      # scores / p live per head
    return x_blk + out_blk + qkv_sc + ctx_sc + weights + per_head


def _pick_block_b(B, T, d_in, d_out, vmem_budget_bytes=48 * 1024 * 1024):
    """Largest divisor of B that fits the VMEM budget while keeping >= 2 grid
    steps whenever B >= 2 (v7x has 2 TensorCores to feed)."""
    best = 1
    for bb in range(1, B + 1):
        if B % bb:
            continue
        if _step_vmem_bytes(bb, T, d_in, d_out) > vmem_budget_bytes:
            continue
        if B // bb >= 2 or B == 1:
            best = bb
    return best


def mha_combined_qkv(x, w_qkv, w_proj, b_proj, *, num_heads, block_b=None):
    """x: (B, T, d_in); w_qkv: (3*d_out, d_in); w_proj: (d_out, d_out); b_proj: (d_out,)."""
    B, T, d_in = x.shape
    three_d_out, _ = w_qkv.shape
    d_out = three_d_out // 3
    assert d_out % num_heads == 0
    head_dim = d_out // num_heads

    if block_b is None:
        block_b = _pick_block_b(B, T, d_in, d_out)
    assert B % block_b == 0

    # Pre-transpose + pre-cast weights once: y = x @ W.T -> x @ W_t (bf16 MXU operand).
    w_qkv_t = jnp.transpose(w_qkv).astype(jnp.bfloat16)      # (d_in, 3*d_out)
    w_proj_t = jnp.transpose(w_proj).astype(jnp.bfloat16)    # (d_out, d_out)
    b_proj_2d = b_proj.reshape(1, d_out).astype(jnp.float32)

    # Flatten batch*seq so the kernel sees dense 2-D tiles (no in-kernel reshape).
    x2 = x.reshape(B * T, d_in)

    kernel = functools.partial(_mha_kernel, num_heads=num_heads, head_dim=head_dim,
                               seq_len=T, block_b=block_b)

    est = _step_vmem_bytes(block_b, T, d_in, d_out)
    vmem_limit = None
    if est > 32 * 1024 * 1024:
        vmem_limit = min(96 * 1024 * 1024, int(est * 1.5))

    def build(single_buffer_weights):
        weight_mode = ({"pipeline_mode": pl.Buffered(1)}
                       if single_buffer_weights else {})
        return pl.pallas_call(
            kernel,
            out_shape=jax.ShapeDtypeStruct((B * T, d_out), x.dtype),
            grid_spec=pltpu.PrefetchScalarGridSpec(
                num_scalar_prefetch=0,
                grid=(B // block_b,),
                in_specs=[
                    pl.BlockSpec((block_b * T, d_in), lambda i: (i, 0)),
                    pl.BlockSpec((d_in, 3 * d_out), lambda i: (0, 0), **weight_mode),
                    pl.BlockSpec((d_out, d_out), lambda i: (0, 0), **weight_mode),
                    pl.BlockSpec((1, d_out), lambda i: (0, 0), **weight_mode),
                ],
                out_specs=pl.BlockSpec((block_b * T, d_out), lambda i: (i, 0)),
                scratch_shapes=[
                    pltpu.VMEM((block_b * T, 3 * d_out), jnp.float32),  # qkv_sc
                    pltpu.VMEM((block_b * T, d_out), jnp.float32),      # ctx_sc
                ],
            ),
            compiler_params=pltpu.CompilerParams(
                dimension_semantics=("parallel",),
                vmem_limit_bytes=vmem_limit),
        )

    try:
        out2 = build(True)(x2, w_qkv_t, w_proj_t, b_proj_2d)
    except Exception:
        # Some JAX builds reject pipeline_mode on the top-level pallas_call;
        # fall back to default (double-buffered) grid-invariant weights.
        out2 = build(False)(x2, w_qkv_t, w_proj_t, b_proj_2d)

    return out2.reshape(B, T, d_out)


def mha_reference(x, w_qkv, w_proj, b_proj, *, num_heads):
    """Pure-JAX (f32) re-implementation of the PyTorch forward (for verification)."""
    B, T, d_in = x.shape
    d_out = w_proj.shape[0]
    head_dim = d_out // num_heads
    qkv = x @ w_qkv.T                                        # (B, T, 3*d_out)
    qkv = qkv.reshape(B, T, 3, num_heads, head_dim).transpose(2, 0, 3, 1, 4)
    q, k, v = qkv[0], qkv[1], qkv[2]                         # (B, H, T, hd)
    scores = q @ jnp.swapaxes(k, -2, -1)                     # (B, H, T, T)
    mask = jnp.triu(jnp.ones((T, T), bool), k=1)
    scores = jnp.where(mask, -jnp.inf, scores)
    attn = jax.nn.softmax(scores / head_dim ** (-0.5), axis=-1)
    ctx = attn @ v                                           # (B, H, T, hd)
    ctx = jnp.swapaxes(ctx, 1, 2).reshape(B, T, d_out)
    return ctx @ w_proj.T + b_proj


if __name__ == "__main__":
    # Small shapes consistent with the module: d_in == d_out (required by its final view()).
    B, T = 2, 8
    d_in = d_out = 32
    num_heads = 4

    key = jax.random.PRNGKey(0)
    kx, kqkv, kwp, kbp = jax.random.split(key, 4)

    x = jax.random.normal(kx, (B, T, d_in), dtype=jnp.float32)
    # nn.Linear-style uniform(-1/sqrt(fan_in), 1/sqrt(fan_in)) init, deterministic.
    lim_qkv = 1.0 / math.sqrt(d_in)
    w_qkv = jax.random.uniform(kqkv, (3 * d_out, d_in), jnp.float32, -lim_qkv, lim_qkv)
    lim_p = 1.0 / math.sqrt(d_out)
    w_proj = jax.random.uniform(kwp, (d_out, d_out), jnp.float32, -lim_p, lim_p)
    b_proj = jax.random.uniform(kbp, (d_out,), jnp.float32, -lim_p, lim_p)

    out = mha_combined_qkv(x, w_qkv, w_proj, b_proj, num_heads=num_heads)
    out = jax.block_until_ready(out)

    ref = mha_reference(x, w_qkv, w_proj, b_proj, num_heads=num_heads)
    assert out.shape == (B, T, d_out)
    # bf16 MXU operands (f32 accumulation) + approx EUP reciprocal -> looser
    # tolerance than a pure-f32 implementation.
    assert jnp.allclose(out, ref, atol=5e-2, rtol=5e-2), "mismatch vs reference"

    print("KERNEL_OK")
</pallas_src>

<mosaic_0001>
module attributes {stable_mosaic.version = 11 : i64} {
  func.func @_mha_kernel(%arg0: i32, %arg1: memref<8x32xf32, #tpu.memory_space<vmem>>, %arg2: memref<32x96xbf16, #tpu.memory_space<vmem>>, %arg3: memref<32x32xbf16, #tpu.memory_space<vmem>>, %arg4: memref<1x32xf32, #tpu.memory_space<vmem>>, %arg5: memref<8x32xf32, #tpu.memory_space<vmem>>, %arg6: memref<8x96xf32, #tpu.memory_space<vmem>>, %arg7: memref<8x32xf32, #tpu.memory_space<vmem>>) attributes {dimension_semantics = [#tpu.dimension_semantics<parallel>], iteration_bounds = array<i64: 2>, scalar_prefetch = 0 : i64, scratch_operands = 2 : i64, tpu.core_type = #tpu.core_type<tc>, window_params = [{transform_indices = @transform_0, window_bounds = array<i64: 8, 32>}, {pipeline_mode = #tpu.pipeline_mode<synchronous>, transform_indices = @transform_1, window_bounds = array<i64: 32, 96>}, {pipeline_mode = #tpu.pipeline_mode<synchronous>, transform_indices = @transform_2, window_bounds = array<i64: 32, 32>}, {pipeline_mode = #tpu.pipeline_mode<synchronous>, transform_indices = @transform_3, window_bounds = array<i64: 1, 32>}, {transform_indices = @transform_4, window_bounds = array<i64: 8, 32>}]} {
    %c0 = arith.constant 0 : index
    %c0_0 = arith.constant 0 : index
    %0 = vector.load %arg1[%c0, %c0_0] : memref<8x32xf32, #tpu.memory_space<vmem>>, vector<8x32xf32>
    %1 = arith.truncf %0 : vector<8x32xf32> to vector<8x32xbf16>
    %c0_1 = arith.constant 0 : index
    %c0_2 = arith.constant 0 : index
    %2 = vector.load %arg2[%c0_1, %c0_2] : memref<32x96xbf16, #tpu.memory_space<vmem>>, vector<32x96xbf16>
    %cst = arith.constant dense<0.000000e+00> : vector<8x96xf32>
    %3 = tpu.matmul %1, %2, %cst {dimension_numbers = #tpu.dot_dimension_numbers<[1], [0], [0], [1], [0, 0, 1, 1], [], []>} : vector<8x32xbf16>, vector<32x96xbf16>, vector<8x96xf32> -> vector<8x96xf32>
    %c0_3 = arith.constant 0 : index
    %c0_4 = arith.constant 0 : index
    %4 = vector.load %arg6[%c0_3, %c0_4] : memref<8x96xf32, #tpu.memory_space<vmem>>, vector<8x96xf32>
    tpu.vector_store %arg6[%c0_3, %c0_4], %3 {strides = array<i32>} : memref<8x96xf32, #tpu.memory_space<vmem>>, vector<8x96xf32>,
    %5 = tpu.iota {dimensions = array<i32: 0>} : vector<8x8xi32>
    %6 = tpu.iota {dimensions = array<i32: 1>} : vector<8x8xi32>
    %7 = arith.cmpi sgt, %6, %5 : vector<8x8xi32>
    %cst_5 = arith.constant -1.000000e+30 : f32
    %cst_6 = arith.constant 0.000000e+00 : f32
    %8 = vector.broadcast %cst_5 : f32 to vector<8x8xf32>
    %9 = vector.broadcast %cst_6 : f32 to vector<8x8xf32>
    %10 = arith.select %7, %8, %9 : vector<8x8xi1>, vector<8x8xf32>
    %c0_7 = arith.constant 0 : index
    %c0_8 = arith.constant 0 : index
    %11 = vector.load %arg6[%c0_7, %c0_8] : memref<8x96xf32, #tpu.memory_space<vmem>>, vector<8x8xf32>
    %c0_9 = arith.constant 0 : index
    %c32 = arith.constant 32 : index
    %12 = vector.load %arg6[%c0_9, %c32] : memref<8x96xf32, #tpu.memory_space<vmem>>, vector<8x8xf32>
    %c0_10 = arith.constant 0 : index
    %c64 = arith.constant 64 : index
    %13 = vector.load %arg6[%c0_10, %c64] : memref<8x96xf32, #tpu.memory_space<vmem>>, vector<8x8xf32>
    %cst_11 = arith.constant 2.82842708 : f32
    %14 = vector.broadcast %cst_11 : f32 to vector<8x8xf32>
    %15 = arith.mulf %11, %14 : vector<8x8xf32>
    %16 = arith.truncf %15 : vector<8x8xf32> to vector<8x8xbf16>
    %17 = arith.truncf %12 : vector<8x8xf32> to vector<8x8xbf16>
    %18 = arith.truncf %13 : vector<8x8xf32> to vector<8x8xbf16>
    %cst_12 = arith.constant dense<0.000000e+00> : vector<8x8xf32>
    %19 = tpu.matmul %16, %17, %cst_12 {dimension_numbers = #tpu.dot_dimension_numbers<[1], [1], [0], [0], [0, 0, 1, 0], [], []>} : vector<8x8xbf16>, vector<8x8xbf16>, vector<8x8xf32> -> vector<8x8xf32>
    %20 = arith.addf %19, %10 : vector<8x8xf32>
    %cst_13 = arith.constant dense<0xFF800000> : vector<8xf32>
    %21 = vector.multi_reduction <maximumf>, %20, %cst_13 [1] : vector<8x8xf32> to vector<8xf32>
    %22 = vector.shape_cast %21 : vector<8xf32> to vector<8x1xf32>
    %23 = vector.broadcast %22 : vector<8x1xf32> to vector<8x8xf32>
    %24 = arith.subf %20, %23 : vector<8x8xf32>
    %25 = math.exp %24 : vector<8x8xf32>
    %cst_14 = arith.constant dense<0.000000e+00> : vector<8xf32>
    %26 = vector.multi_reduction <add>, %25, %cst_14 [1] : vector<8x8xf32> to vector<8xf32>
    %27 = vector.shape_cast %26 : vector<8xf32> to vector<8x1xf32>
    %28 = arith.truncf %25 : vector<8x8xf32> to vector<8x8xbf16>
    %cst_15 = arith.constant dense<0.000000e+00> : vector<8x8xf32>
    %29 = tpu.matmul %28, %18, %cst_15 {dimension_numbers = #tpu.dot_dimension_numbers<[1], [0], [0], [1], [0, 0, 1, 1], [], []>} : vector<8x8xbf16>, vector<8x8xbf16>, vector<8x8xf32> -> vector<8x8xf32>
    %30 = tpu.reciprocal %27 {approx = true} : vector<8x1xf32> -> vector<8x1xf32>
    %31 = vector.broadcast %30 : vector<8x1xf32> to vector<8x8xf32>
    %32 = arith.mulf %29, %31 : vector<8x8xf32>
    %c0_16 = arith.constant 0 : index
    %c0_17 = arith.constant 0 : index
    %33 = vector.load %arg7[%c0_16, %c0_17] : memref<8x32xf32, #tpu.memory_space<vmem>>, vector<8x8xf32>
    tpu.vector_store %arg7[%c0_16, %c0_17], %32 {strides = array<i32>} : memref<8x32xf32, #tpu.memory_space<vmem>>, vector<8x8xf32>,
    %c0_18 = arith.constant 0 : index
    %c8 = arith.constant 8 : index
    %34 = vector.load %arg6[%c0_18, %c8] : memref<8x96xf32, #tpu.memory_space<vmem>>, vector<8x8xf32>
    %c0_19 = arith.constant 0 : index
    %c40 = arith.constant 40 : index
    %35 = vector.load %arg6[%c0_19, %c40] : memref<8x96xf32, #tpu.memory_space<vmem>>, vector<8x8xf32>
    %c0_20 = arith.constant 0 : index
    %c72 = arith.constant 72 : index
    %36 = vector.load %arg6[%c0_20, %c72] : memref<8x96xf32, #tpu.memory_space<vmem>>, vector<8x8xf32>
    %cst_21 = arith.constant 2.82842708 : f32
    %37 = vector.broadcast %cst_21 : f32 to vector<8x8xf32>
    %38 = arith.mulf %34, %37 : vector<8x8xf32>
    %39 = arith.truncf %38 : vector<8x8xf32> to vector<8x8xbf16>
    %40 = arith.truncf %35 : vector<8x8xf32> to vector<8x8xbf16>
    %41 = arith.truncf %36 : vector<8x8xf32> to vector<8x8xbf16>
    %cst_22 = arith.constant dense<0.000000e+00> : vector<8x8xf32>
    %42 = tpu.matmul %39, %40, %cst_22 {dimension_numbers = #tpu.dot_dimension_numbers<[1], [1], [0], [0], [0, 0, 1, 0], [], []>} : vector<8x8xbf16>, vector<8x8xbf16>, vector<8x8xf32> -> vector<8x8xf32>
    %43 = arith.addf %42, %10 : vector<8x8xf32>
    %cst_23 = arith.constant dense<0xFF800000> : vector<8xf32>
    %44 = vector.multi_reduction <maximumf>, %43, %cst_23 [1] : vector<8x8xf32> to vector<8xf32>
    %45 = vector.shape_cast %44 : vector<8xf32> to vector<8x1xf32>
    %46 = vector.broadcast %45 : vector<8x1xf32> to vector<8x8xf32>
    %47 = arith.subf %43, %46 : vector<8x8xf32>
    %48 = math.exp %47 : vector<8x8xf32>
    %cst_24 = arith.constant dense<0.000000e+00> : vector<8xf32>
    %49 = vector.multi_reduction <add>, %48, %cst_24 [1] : vector<8x8xf32> to vector<8xf32>
    %50 = vector.shape_cast %49 : vector<8xf32> to vector<8x1xf32>
    %51 = arith.truncf %48 : vector<8x8xf32> to vector<8x8xbf16>
    %cst_25 = arith.constant dense<0.000000e+00> : vector<8x8xf32>
    %52 = tpu.matmul %51, %41, %cst_25 {dimension_numbers = #tpu.dot_dimension_numbers<[1], [0], [0], [1], [0, 0, 1, 1], [], []>} : vector<8x8xbf16>, vector<8x8xbf16>, vector<8x8xf32> -> vector<8x8xf32>
    %53 = tpu.reciprocal %50 {approx = true} : vector<8x1xf32> -> vector<8x1xf32>
    %54 = vector.broadcast %53 : vector<8x1xf32> to vector<8x8xf32>
    %55 = arith.mulf %52, %54 : vector<8x8xf32>
    %c0_26 = arith.constant 0 : index
    %c8_27 = arith.constant 8 : index
    %56 = vector.load %arg7[%c0_26, %c8_27] : memref<8x32xf32, #tpu.memory_space<vmem>>, vector<8x8xf32>
    tpu.vector_store %arg7[%c0_26, %c8_27], %55 {strides = array<i32>} : memref<8x32xf32, #tpu.memory_space<vmem>>, vector<8x8xf32>,
    %c0_28 = arith.constant 0 : index
    %c16 = arith.constant 16 : index
    %57 = vector.load %arg6[%c0_28, %c16] : memref<8x96xf32, #tpu.memory_space<vmem>>, vector<8x8xf32>
    %c0_29 = arith.constant 0 : index
    %c48 = arith.constant 48 : index
    %58 = vector.load %arg6[%c0_29, %c48] : memref<8x96xf32, #tpu.memory_space<vmem>>, vector<8x8xf32>
    %c0_30 = arith.constant 0 : index
    %c80 = arith.constant 80 : index
    %59 = vector.load %arg6[%c0_30, %c80] : memref<8x96xf32, #tpu.memory_space<vmem>>, vector<8x8xf32>
    %cst_31 = arith.constant 2.82842708 : f32
    %60 = vector.broadcast %cst_31 : f32 to vector<8x8xf32>
    %61 = arith.mulf %57, %60 : vector<8x8xf32>
    %62 = arith.truncf %61 : vector<8x8xf32> to vector<8x8xbf16>
    %63 = arith.truncf %58 : vector<8x8xf32> to vector<8x8xbf16>
    %64 = arith.truncf %59 : vector<8x8xf32> to vector<8x8xbf16>
    %cst_32 = arith.constant dense<0.000000e+00> : vector<8x8xf32>
    %65 = tpu.matmul %62, %63, %cst_32 {dimension_numbers = #tpu.dot_dimension_numbers<[1], [1], [0], [0], [0, 0, 1, 0], [], []>} : vector<8x8xbf16>, vector<8x8xbf16>, vector<8x8xf32> -> vector<8x8xf32>
    %66 = arith.addf %65, %10 : vector<8x8xf32>
    %cst_33 = arith.constant dense<0xFF800000> : vector<8xf32>
    %67 = vector.multi_reduction <maximumf>, %66, %cst_33 [1] : vector<8x8xf32> to vector<8xf32>
    %68 = vector.shape_cast %67 : vector<8xf32> to vector<8x1xf32>
    %69 = vector.broadcast %68 : vector<8x1xf32> to vector<8x8xf32>
    %70 = arith.subf %66, %69 : vector<8x8xf32>
    %71 = math.exp %70 : vector<8x8xf32>
    %cst_34 = arith.constant dense<0.000000e+00> : vector<8xf32>
    %72 = vector.multi_reduction <add>, %71, %cst_34 [1] : vector<8x8xf32> to vector<8xf32>
    %73 = vector.shape_cast %72 : vector<8xf32> to vector<8x1xf32>
    %74 = arith.truncf %71 : vector<8x8xf32> to vector<8x8xbf16>
    %cst_35 = arith.constant dense<0.000000e+00> : vector<8x8xf32>
    %75 = tpu.matmul %74, %64, %cst_35 {dimension_numbers = #tpu.dot_dimension_numbers<[1], [0], [0], [1], [0, 0, 1, 1], [], []>} : vector<8x8xbf16>, vector<8x8xbf16>, vector<8x8xf32> -> vector<8x8xf32>
    %76 = tpu.reciprocal %73 {approx = true} : vector<8x1xf32> -> vector<8x1xf32>
    %77 = vector.broadcast %76 : vector<8x1xf32> to vector<8x8xf32>
    %78 = arith.mulf %75, %77 : vector<8x8xf32>
    %c0_36 = arith.constant 0 : index
    %c16_37 = arith.constant 16 : index
    %79 = vector.load %arg7[%c0_36, %c16_37] : memref<8x32xf32, #tpu.memory_space<vmem>>, vector<8x8xf32>
    tpu.vector_store %arg7[%c0_36, %c16_37], %78 {strides = array<i32>} : memref<8x32xf32, #tpu.memory_space<vmem>>, vector<8x8xf32>,
    %c0_38 = arith.constant 0 : index
    %c24 = arith.constant 24 : index
    %80 = vector.load %arg6[%c0_38, %c24] : memref<8x96xf32, #tpu.memory_space<vmem>>, vector<8x8xf32>
    %c0_39 = arith.constant 0 : index
    %c56 = arith.constant 56 : index
    %81 = vector.load %arg6[%c0_39, %c56] : memref<8x96xf32, #tpu.memory_space<vmem>>, vector<8x8xf32>
    %c0_40 = arith.constant 0 : index
    %c88 = arith.constant 88 : index
    %82 = vector.load %arg6[%c0_40, %c88] : memref<8x96xf32, #tpu.memory_space<vmem>>, vector<8x8xf32>
    %cst_41 = arith.constant 2.82842708 : f32
    %83 = vector.broadcast %cst_41 : f32 to vector<8x8xf32>
    %84 = arith.mulf %80, %83 : vector<8x8xf32>
    %85 = arith.truncf %84 : vector<8x8xf32> to vector<8x8xbf16>
    %86 = arith.truncf %81 : vector<8x8xf32> to vector<8x8xbf16>
    %87 = arith.truncf %82 : vector<8x8xf32> to vector<8x8xbf16>
    %cst_42 = arith.constant dense<0.000000e+00> : vector<8x8xf32>
    %88 = tpu.matmul %85, %86, %cst_42 {dimension_numbers = #tpu.dot_dimension_numbers<[1], [1], [0], [0], [0, 0, 1, 0], [], []>} : vector<8x8xbf16>, vector<8x8xbf16>, vector<8x8xf32> -> vector<8x8xf32>
    %89 = arith.addf %88, %10 : vector<8x8xf32>
    %cst_43 = arith.constant dense<0xFF800000> : vector<8xf32>
    %90 = vector.multi_reduction <maximumf>, %89, %cst_43 [1] : vector<8x8xf32> to vector<8xf32>
    %91 = vector.shape_cast %90 : vector<8xf32> to vector<8x1xf32>
    %92 = vector.broadcast %91 : vector<8x1xf32> to vector<8x8xf32>
    %93 = arith.subf %89, %92 : vector<8x8xf32>
    %94 = math.exp %93 : vector<8x8xf32>
    %cst_44 = arith.constant dense<0.000000e+00> : vector<8xf32>
    %95 = vector.multi_reduction <add>, %94, %cst_44 [1] : vector<8x8xf32> to vector<8xf32>
    %96 = vector.shape_cast %95 : vector<8xf32> to vector<8x1xf32>
    %97 = arith.truncf %94 : vector<8x8xf32> to vector<8x8xbf16>
    %cst_45 = arith.constant dense<0.000000e+00> : vector<8x8xf32>
    %98 = tpu.matmul %97, %87, %cst_45 {dimension_numbers = #tpu.dot_dimension_numbers<[1], [0], [0], [1], [0, 0, 1, 1], [], []>} : vector<8x8xbf16>, vector<8x8xbf16>, vector<8x8xf32> -> vector<8x8xf32>
    %99 = tpu.reciprocal %96 {approx = true} : vector<8x1xf32> -> vector<8x1xf32>
    %100 = vector.broadcast %99 : vector<8x1xf32> to vector<8x8xf32>
    %101 = arith.mulf %98, %100 : vector<8x8xf32>
    %c0_46 = arith.constant 0 : index
    %c24_47 = arith.constant 24 : index
    %102 = vector.load %arg7[%c0_46, %c24_47] : memref<8x32xf32, #tpu.memory_space<vmem>>, vector<8x8xf32>
    tpu.vector_store %arg7[%c0_46, %c24_47], %101 {strides = array<i32>} : memref<8x32xf32, #tpu.memory_space<vmem>>, vector<8x8xf32>,
    %c0_48 = arith.constant 0 : index
    %c0_49 = arith.constant 0 : index
    %103 = vector.load %arg7[%c0_48, %c0_49] : memref<8x32xf32, #tpu.memory_space<vmem>>, vector<8x32xf32>
    %104 = arith.truncf %103 : vector<8x32xf32> to vector<8x32xbf16>
    %c0_50 = arith.constant 0 : index
    %c0_51 = arith.constant 0 : index
    %105 = vector.load %arg3[%c0_50, %c0_51] : memref<32x32xbf16, #tpu.memory_space<vmem>>, vector<32x32xbf16>
    %cst_52 = arith.constant dense<0.000000e+00> : vector<8x32xf32>
    %106 = tpu.matmul %104, %105, %cst_52 {dimension_numbers = #tpu.dot_dimension_numbers<[1], [0], [0], [1], [0, 0, 1, 1], [], []>} : vector<8x32xbf16>, vector<32x32xbf16>, vector<8x32xf32> -> vector<8x32xf32>
    %c0_53 = arith.constant 0 : index
    %c0_54 = arith.constant 0 : index
    %107 = vector.load %arg4[%c0_53, %c0_54] : memref<1x32xf32, #tpu.memory_space<vmem>>, vector<1x32xf32>
    %108 = vector.broadcast %107 : vector<1x32xf32> to vector<8x32xf32>
    %109 = arith.addf %106, %108 : vector<8x32xf32>
    %c0_55 = arith.constant 0 : index
    %c0_56 = arith.constant 0 : index
    %110 = vector.load %arg5[%c0_55, %c0_56] : memref<8x32xf32, #tpu.memory_space<vmem>>, vector<8x32xf32>
    tpu.vector_store %arg5[%c0_55, %c0_56], %109 {strides = array<i32>} : memref<8x32xf32, #tpu.memory_space<vmem>>, vector<8x32xf32>,
    return
  }
  func.func @transform_0(%arg0: i32) -> (i32, i32) {
    %c0_i32 = arith.constant 0 : i32
    %c0_i32_0 = arith.constant 0 : i32
    return %arg0, %c0_i32 : i32, i32
  }
  func.func @transform_1(%arg0: i32) -> (i32, i32) {
    %c0_i32 = arith.constant 0 : i32
    %c0_i32_0 = arith.constant 0 : i32
    %c0_i32_1 = arith.constant 0 : i32
    return %c0_i32, %c0_i32_0 : i32, i32
  }
  func.func @transform_2(%arg0: i32) -> (i32, i32) {
    %c0_i32 = arith.constant 0 : i32
    %c0_i32_0 = arith.constant 0 : i32
    %c0_i32_1 = arith.constant 0 : i32
    return %c0_i32, %c0_i32_0 : i32, i32
  }
  func.func @transform_3(%arg0: i32) -> (i32, i32) {
    %c0_i32 = arith.constant 0 : i32
    %c0_i32_0 = arith.constant 0 : i32
    %c0_i32_1 = arith.constant 0 : i32
    return %c0_i32, %c0_i32_0 : i32, i32
  }
  func.func @transform_4(%arg0: i32) -> (i32, i32) {
    %c0_i32 = arith.constant 0 : i32
    %c0_i32_0 = arith.constant 0 : i32
    return %arg0, %c0_i32 : i32, i32
  }
}

module attributes {stable_mosaic.version = 11 : i64} {
  func.func @_mha_kernel(%arg0: i32, %arg1: memref<8x32xf32, #tpu.memory_space<vmem>>, %arg2: memref<32x96xbf16, #tpu.memory_space<vmem>>, %arg3: memref<32x32xbf16, #tpu.memory_space<vmem>>, %arg4: memref<1x32xf32, #tpu.memory_space<vmem>>, %arg5: memref<8x32xf32, #tpu.memory_space<vmem>>, %arg6: memref<8x96xf32, #tpu.memory_space<vmem>>, %arg7: memref<8x32xf32, #tpu.memory_space<vmem>>) attributes {dimension_semantics = [#tpu.dimension_semantics<parallel>], iteration_bounds = array<i64: 2>, scalar_prefetch = 0 : i64, scratch_operands = 2 : i64, tpu.core_type = #tpu.core_type<tc>, window_params = [{transform_indices = @transform_0, window_bounds = array<i64: 8, 32>}, {pipeline_mode = #tpu.pipeline_mode<synchronous>, transform_indices = @transform_1, window_bounds = array<i64: 32, 96>}, {pipeline_mode = #tpu.pipeline_mode<synchronous>, transform_indices = @transform_2, window_bounds = array<i64: 32, 32>}, {pipeline_mode = #tpu.pipeline_mode<synchronous>, transform_indices = @transform_3, window_bounds = array<i64: 1, 32>}, {transform_indices = @transform_4, window_bounds = array<i64: 8, 32>}]} {
    %c0 = arith.constant 0 : index
    %c0_0 = arith.constant 0 : index
    %0 = vector.load %arg1[%c0, %c0_0] : memref<8x32xf32, #tpu.memory_space<vmem>>, vector<8x32xf32>
    %1 = arith.truncf %0 : vector<8x32xf32> to vector<8x32xbf16>
    %c0_1 = arith.constant 0 : index
    %c0_2 = arith.constant 0 : index
    %2 = vector.load %arg2[%c0_1, %c0_2] : memref<32x96xbf16, #tpu.memory_space<vmem>>, vector<32x96xbf16>
    %cst = arith.constant dense<0.000000e+00> : vector<8x96xf32>
    %3 = tpu.matmul %1, %2, %cst {dimension_numbers = #tpu.dot_dimension_numbers<[1], [0], [0], [1], [0, 0, 1, 1], [], []>} : vector<8x32xbf16>, vector<32x96xbf16>, vector<8x96xf32> -> vector<8x96xf32>
    %c0_3 = arith.constant 0 : index
    %c0_4 = arith.constant 0 : index
    %4 = vector.load %arg6[%c0_3, %c0_4] : memref<8x96xf32, #tpu.memory_space<vmem>>, vector<8x96xf32>
    tpu.vector_store %arg6[%c0_3, %c0_4], %3 {strides = array<i32>} : memref<8x96xf32, #tpu.memory_space<vmem>>, vector<8x96xf32>,
    %5 = tpu.iota {dimensions = array<i32: 0>} : vector<8x8xi32>
    %6 = tpu.iota {dimensions = array<i32: 1>} : vector<8x8xi32>
    %7 = arith.cmpi sgt, %6, %5 : vector<8x8xi32>
    %cst_5 = arith.constant -1.000000e+30 : f32
    %cst_6 = arith.constant 0.000000e+00 : f32
    %8 = vector.broadcast %cst_5 : f32 to vector<8x8xf32>
    %9 = vector.broadcast %cst_6 : f32 to vector<8x8xf32>
    %10 = arith.select %7, %8, %9 : vector<8x8xi1>, vector<8x8xf32>
    %c0_7 = arith.constant 0 : index
    %c0_8 = arith.constant 0 : index
    %11 = vector.load %arg6[%c0_7, %c0_8] : memref<8x96xf32, #tpu.memory_space<vmem>>, vector<8x8xf32>
    %c0_9 = arith.constant 0 : index
    %c32 = arith.constant 32 : index
    %12 = vector.load %arg6[%c0_9, %c32] : memref<8x96xf32, #tpu.memory_space<vmem>>, vector<8x8xf32>
    %c0_10 = arith.constant 0 : index
    %c64 = arith.constant 64 : index
    %13 = vector.load %arg6[%c0_10, %c64] : memref<8x96xf32, #tpu.memory_space<vmem>>, vector<8x8xf32>
    %cst_11 = arith.constant 2.82842708 : f32
    %14 = vector.broadcast %cst_11 : f32 to vector<8x8xf32>
    %15 = arith.mulf %11, %14 : vector<8x8xf32>
    %16 = arith.truncf %15 : vector<8x8xf32> to vector<8x8xbf16>
    %17 = arith.truncf %12 : vector<8x8xf32> to vector<8x8xbf16>
    %18 = arith.truncf %13 : vector<8x8xf32> to vector<8x8xbf16>
    %cst_12 = arith.constant dense<0.000000e+00> : vector<8x8xf32>
    %19 = tpu.matmul %16, %17, %cst_12 {dimension_numbers = #tpu.dot_dimension_numbers<[1], [1], [0], [0], [0, 0, 1, 0], [], []>} : vector<8x8xbf16>, vector<8x8xbf16>, vector<8x8xf32> -> vector<8x8xf32>
    %20 = arith.addf %19, %10 : vector<8x8xf32>
    %cst_13 = arith.constant dense<0xFF800000> : vector<8xf32>
    %21 = vector.multi_reduction <maximumf>, %20, %cst_13 [1] : vector<8x8xf32> to vector<8xf32>
    %22 = vector.shape_cast %21 : vector<8xf32> to vector<8x1xf32>
    %23 = vector.broadcast %22 : vector<8x1xf32> to vector<8x8xf32>
    %24 = arith.subf %20, %23 : vector<8x8xf32>
    %25 = math.exp %24 : vector<8x8xf32>
    %cst_14 = arith.constant dense<0.000000e+00> : vector<8xf32>
    %26 = vector.multi_reduction <add>, %25, %cst_14 [1] : vector<8x8xf32> to vector<8xf32>
    %27 = vector.shape_cast %26 : vector<8xf32> to vector<8x1xf32>
    %28 = arith.truncf %25 : vector<8x8xf32> to vector<8x8xbf16>
    %cst_15 = arith.constant dense<0.000000e+00> : vector<8x8xf32>
    %29 = tpu.matmul %28, %18, %cst_15 {dimension_numbers = #tpu.dot_dimension_numbers<[1], [0], [0], [1], [0, 0, 1, 1], [], []>} : vector<8x8xbf16>, vector<8x8xbf16>, vector<8x8xf32> -> vector<8x8xf32>
    %30 = tpu.reciprocal %27 {approx = true} : vector<8x1xf32> -> vector<8x1xf32>
    %31 = vector.broadcast %30 : vector<8x1xf32> to vector<8x8xf32>
    %32 = arith.mulf %29, %31 : vector<8x8xf32>
    %c0_16 = arith.constant 0 : index
    %c0_17 = arith.constant 0 : index
    %33 = vector.load %arg7[%c0_16, %c0_17] : memref<8x32xf32, #tpu.memory_space<vmem>>, vector<8x8xf32>
    tpu.vector_store %arg7[%c0_16, %c0_17], %32 {strides = array<i32>} : memref<8x32xf32, #tpu.memory_space<vmem>>, vector<8x8xf32>,
    %c0_18 = arith.constant 0 : index
    %c8 = arith.constant 8 : index
    %34 = vector.load %arg6[%c0_18, %c8] : memref<8x96xf32, #tpu.memory_space<vmem>>, vector<8x8xf32>
    %c0_19 = arith.constant 0 : index
    %c40 = arith.constant 40 : index
    %35 = vector.load %arg6[%c0_19, %c40] : memref<8x96xf32, #tpu.memory_space<vmem>>, vector<8x8xf32>
    %c0_20 = arith.constant 0 : index
    %c72 = arith.constant 72 : index
    %36 = vector.load %arg6[%c0_20, %c72] : memref<8x96xf32, #tpu.memory_space<vmem>>, vector<8x8xf32>
    %cst_21 = arith.constant 2.82842708 : f32
    %37 = vector.broadcast %cst_21 : f32 to vector<8x8xf32>
    %38 = arith.mulf %34, %37 : vector<8x8xf32>
    %39 = arith.truncf %38 : vector<8x8xf32> to vector<8x8xbf16>
    %40 = arith.truncf %35 : vector<8x8xf32> to vector<8x8xbf16>
    %41 = arith.truncf %36 : vector<8x8xf32> to vector<8x8xbf16>
    %cst_22 = arith.constant dense<0.000000e+00> : vector<8x8xf32>
    %42 = tpu.matmul %39, %40, %cst_22 {dimension_numbers = #tpu.dot_dimension_numbers<[1], [1], [0], [0], [0, 0, 1, 0], [], []>} : vector<8x8xbf16>, vector<8x8xbf16>, vector<8x8xf32> -> vector<8x8xf32>
    %43 = arith.addf %42, %10 : vector<8x8xf32>
    %cst_23 = arith.constant dense<0xFF800000> : vector<8xf32>
    %44 = vector.multi_reduction <maximumf>, %43, %cst_23 [1] : vector<8x8xf32> to vector<8xf32>
    %45 = vector.shape_cast %44 : vector<8xf32> to vector<8x1xf32>
    %46 = vector.broadcast %45 : vector<8x1xf32> to vector<8x8xf32>
    %47 = arith.subf %43, %46 : vector<8x8xf32>
    %48 = math.exp %47 : vector<8x8xf32>
    %cst_24 = arith.constant dense<0.000000e+00> : vector<8xf32>
    %49 = vector.multi_reduction <add>, %48, %cst_24 [1] : vector<8x8xf32> to vector<8xf32>
    %50 = vector.shape_cast %49 : vector<8xf32> to vector<8x1xf32>
    %51 = arith.truncf %48 : vector<8x8xf32> to vector<8x8xbf16>
    %cst_25 = arith.constant dense<0.000000e+00> : vector<8x8xf32>
    %52 = tpu.matmul %51, %41, %cst_25 {dimension_numbers = #tpu.dot_dimension_numbers<[1], [0], [0], [1], [0, 0, 1, 1], [], []>} : vector<8x8xbf16>, vector<8x8xbf16>, vector<8x8xf32> -> vector<8x8xf32>
    %53 = tpu.reciprocal %50 {approx = true} : vector<8x1xf32> -> vector<8x1xf32>
    %54 = vector.broadcast %53 : vector<8x1xf32> to vector<8x8xf32>
    %55 = arith.mulf %52, %54 : vector<8x8xf32>
    %c0_26 = arith.constant 0 : index
    %c8_27 = arith.constant 8 : index
    %56 = vector.load %arg7[%c0_26, %c8_27] : memref<8x32xf32, #tpu.memory_space<vmem>>, vector<8x8xf32>
    tpu.vector_store %arg7[%c0_26, %c8_27], %55 {strides = array<i32>} : memref<8x32xf32, #tpu.memory_space<vmem>>, vector<8x8xf32>,
    %c0_28 = arith.constant 0 : index
    %c16 = arith.constant 16 : index
    %57 = vector.load %arg6[%c0_28, %c16] : memref<8x96xf32, #tpu.memory_space<vmem>>, vector<8x8xf32>
    %c0_29 = arith.constant 0 : index
    %c48 = arith.constant 48 : index
    %58 = vector.load %arg6[%c0_29, %c48] : memref<8x96xf32, #tpu.memory_space<vmem>>, vector<8x8xf32>
    %c0_30 = arith.constant 0 : index
    %c80 = arith.constant 80 : index
    %59 = vector.load %arg6[%c0_30, %c80] : memref<8x96xf32, #tpu.memory_space<vmem>>, vector<8x8xf32>
    %cst_31 = arith.constant 2.82842708 : f32
    %60 = vector.broadcast %cst_31 : f32 to vector<8x8xf32>
    %61 = arith.mulf %57, %60 : vector<8x8xf32>
    %62 = arith.truncf %61 : vector<8x8xf32> to vector<8x8xbf16>
    %63 = arith.truncf %58 : vector<8x8xf32> to vector<8x8xbf16>
    %64 = arith.truncf %59 : vector<8x8xf32> to vector<8x8xbf16>
    %cst_32 = arith.constant dense<0.000000e+00> : vector<8x8xf32>
    %65 = tpu.matmul %62, %63, %cst_32 {dimension_numbers = #tpu.dot_dimension_numbers<[1], [1], [0], [0], [0, 0, 1, 0], [], []>} : vector<8x8xbf16>, vector<8x8xbf16>, vector<8x8xf32> -> vector<8x8xf32>
    %66 = arith.addf %65, %10 : vector<8x8xf32>
    %cst_33 = arith.constant dense<0xFF800000> : vector<8xf32>
    %67 = vector.multi_reduction <maximumf>, %66, %cst_33 [1] : vector<8x8xf32> to vector<8xf32>
    %68 = vector.shape_cast %67 : vector<8xf32> to vector<8x1xf32>
    %69 = vector.broadcast %68 : vector<8x1xf32> to vector<8x8xf32>
    %70 = arith.subf %66, %69 : vector<8x8xf32>
    %71 = math.exp %70 : vector<8x8xf32>
    %cst_34 = arith.constant dense<0.000000e+00> : vector<8xf32>
    %72 = vector.multi_reduction <add>, %71, %cst_34 [1] : vector<8x8xf32> to vector<8xf32>
    %73 = vector.shape_cast %72 : vector<8xf32> to vector<8x1xf32>
    %74 = arith.truncf %71 : vector<8x8xf32> to vector<8x8xbf16>
    %cst_35 = arith.constant dense<0.000000e+00> : vector<8x8xf32>
    %75 = tpu.matmul %74, %64, %cst_35 {dimension_numbers = #tpu.dot_dimension_numbers<[1], [0], [0], [1], [0, 0, 1, 1], [], []>} : vector<8x8xbf16>, vector<8x8xbf16>, vector<8x8xf32> -> vector<8x8xf32>
    %76 = tpu.reciprocal %73 {approx = true} : vector<8x1xf32> -> vector<8x1xf32>
    %77 = vector.broadcast %76 : vector<8x1xf32> to vector<8x8xf32>
    %78 = arith.mulf %75, %77 : vector<8x8xf32>
    %c0_36 = arith.constant 0 : index
    %c16_37 = arith.constant 16 : index
    %79 = vector.load %arg7[%c0_36, %c16_37] : memref<8x32xf32, #tpu.memory_space<vmem>>, vector<8x8xf32>
    tpu.vector_store %arg7[%c0_36, %c16_37], %78 {strides = array<i32>} : memref<8x32xf32, #tpu.memory_space<vmem>>, vector<8x8xf32>,
    %c0_38 = arith.constant 0 : index
    %c24 = arith.constant 24 : index
    %80 = vector.load %arg6[%c0_38, %c24] : memref<8x96xf32, #tpu.memory_space<vmem>>, vector<8x8xf32>
    %c0_39 = arith.constant 0 : index
    %c56 = arith.constant 56 : index
    %81 = vector.load %arg6[%c0_39, %c56] : memref<8x96xf32, #tpu.memory_space<vmem>>, vector<8x8xf32>
    %c0_40 = arith.constant 0 : index
    %c88 = arith.constant 88 : index
    %82 = vector.load %arg6[%c0_40, %c88] : memref<8x96xf32, #tpu.memory_space<vmem>>, vector<8x8xf32>
    %cst_41 = arith.constant 2.82842708 : f32
    %83 = vector.broadcast %cst_41 : f32 to vector<8x8xf32>
    %84 = arith.mulf %80, %83 : vector<8x8xf32>
    %85 = arith.truncf %84 : vector<8x8xf32> to vector<8x8xbf16>
    %86 = arith.truncf %81 : vector<8x8xf32> to vector<8x8xbf16>
    %87 = arith.truncf %82 : vector<8x8xf32> to vector<8x8xbf16>
    %cst_42 = arith.constant dense<0.000000e+00> : vector<8x8xf32>
    %88 = tpu.matmul %85, %86, %cst_42 {dimension_numbers = #tpu.dot_dimension_numbers<[1], [1], [0], [0], [0, 0, 1, 0], [], []>} : vector<8x8xbf16>, vector<8x8xbf16>, vector<8x8xf32> -> vector<8x8xf32>
    %89 = arith.addf %88, %10 : vector<8x8xf32>
    %cst_43 = arith.constant dense<0xFF800000> : vector<8xf32>
    %90 = vector.multi_reduction <maximumf>, %89, %cst_43 [1] : vector<8x8xf32> to vector<8xf32>
    %91 = vector.shape_cast %90 : vector<8xf32> to vector<8x1xf32>
    %92 = vector.broadcast %91 : vector<8x1xf32> to vector<8x8xf32>
    %93 = arith.subf %89, %92 : vector<8x8xf32>
    %94 = math.exp %93 : vector<8x8xf32>
    %cst_44 = arith.constant dense<0.000000e+00> : vector<8xf32>
    %95 = vector.multi_reduction <add>, %94, %cst_44 [1] : vector<8x8xf32> to vector<8xf32>
    %96 = vector.shape_cast %95 : vector<8xf32> to vector<8x1xf32>
    %97 = arith.truncf %94 : vector<8x8xf32> to vector<8x8xbf16>
    %cst_45 = arith.constant dense<0.000000e+00> : vector<8x8xf32>
    %98 = tpu.matmul %97, %87, %cst_45 {dimension_numbers = #tpu.dot_dimension_numbers<[1], [0], [0], [1], [0, 0, 1, 1], [], []>} : vector<8x8xbf16>, vector<8x8xbf16>, vector<8x8xf32> -> vector<8x8xf32>
    %99 = tpu.reciprocal %96 {approx = true} : vector<8x1xf32> -> vector<8x1xf32>
    %100 = vector.broadcast %99 : vector<8x1xf32> to vector<8x8xf32>
    %101 = arith.mulf %98, %100 : vector<8x8xf32>
    %c0_46 = arith.constant 0 : index
    %c24_47 = arith.constant 24 : index
    %102 = vector.load %arg7[%c0_46, %c24_47] : memref<8x32xf32, #tpu.memory_space<vmem>>, vector<8x8xf32>
    tpu.vector_store %arg7[%c0_46, %c24_47], %101 {strides = array<i32>} : memref<8x32xf32, #tpu.memory_space<vmem>>, vector<8x8xf32>,
    %c0_48 = arith.constant 0 : index
    %c0_49 = arith.constant 0 : index
    %103 = vector.load %arg7[%c0_48, %c0_49] : memref<8x32xf32, #tpu.memory_space<vmem>>, vector<8x32xf32>
    %104 = arith.truncf %103 : vector<8x32xf32> to vector<8x32xbf16>
    %c0_50 = arith.constant 0 : index
    %c0_51 = arith.constant 0 : index
    %105 = vector.load %arg3[%c0_50, %c0_51] : memref<32x32xbf16, #tpu.memory_space<vmem>>, vector<32x32xbf16>
    %cst_52 = arith.constant dense<0.000000e+00> : vector<8x32xf32>
    %106 = tpu.matmul %104, %105, %cst_52 {dimension_numbers = #tpu.dot_dimension_numbers<[1], [0], [0], [1], [0, 0, 1, 1], [], []>} : vector<8x32xbf16>, vector<32x32xbf16>, vector<8x32xf32> -> vector<8x32xf32>
    %c0_53 = arith.constant 0 : index
    %c0_54 = arith.constant 0 : index
    %107 = vector.load %arg4[%c0_53, %c0_54] : memref<1x32xf32, #tpu.memory_space<vmem>>, vector<1x32xf32>
    %108 = vector.broadcast %107 : vector<1x32xf32> to vector<8x32xf32>
    %109 = arith.addf %106, %108 : vector<8x32xf32>
    %c0_55 = arith.constant 0 : index
    %c0_56 = arith.constant 0 : index
    %110 = vector.load %arg5[%c0_55, %c0_56] : memref<8x32xf32, #tpu.memory_space<vmem>>, vector<8x32xf32>
    tpu.vector_store %arg5[%c0_55, %c0_56], %109 {strides = array<i32>} : memref<8x32xf32, #tpu.memory_space<vmem>>, vector<8x32xf32>,
    return
  }
  func.func @transform_0(%arg0: i32) -> (i32, i32) {
    %c0_i32 = arith.constant 0 : i32
    %c0_i32_0 = arith.constant 0 : i32
    return %arg0, %c0_i32 : i32, i32
  }
  func.func @transform_1(%arg0: i32) -> (i32, i32) {
    %c0_i32 = arith.constant 0 : i32
    %c0_i32_0 = arith.constant 0 : i32
    %c0_i32_1 = arith.constant 0 : i32
    return %c0_i32, %c0_i32_0 : i32, i32
  }
  func.func @transform_2(%arg0: i32) -> (i32, i32) {
    %c0_i32 = arith.constant 0 : i32
    %c0_i32_0 = arith.constant 0 : i32
    %c0_i32_1 = arith.constant 0 : i32
    return %c0_i32, %c0_i32_0 : i32, i32
  }
  func.func @transform_3(%arg0: i32) -> (i32, i32) {
    %c0_i32 = arith.constant 0 : i32
    %c0_i32_0 = arith.constant 0 : i32
    %c0_i32_1 = arith.constant 0 : i32
    return %c0_i32, %c0_i32_0 : i32, i32
  }
  func.func @transform_4(%arg0: i32) -> (i32, i32) {
    %c0_i32 = arith.constant 0 : i32
    %c0_i32_0 = arith.constant 0 : i32
    return %arg0, %c0_i32 : i32, i32
  }
}

</mosaic_0001>

<llo_original>
// kernel: tpu_custom_call.1
$region0: #{tpu_custom_call.1}
  #allocation0 [shape = 'u32[]', space=smem, size = 0x4, offset = 0x4, fixed_abs, tag = 'smem constant byte address 0x4 - core index']
  #allocation1 [shape = 'u32[144,128]{1,0:T(1,128)}', space=vmem, size = 0x12000, scoped, tag = 'internal scratch']
  #allocation2 [shape = 'f32[8,96]{1,0:T(8,128)}', space=vmem, size = 0x1000, scoped, tag = 'scratch operand']
  #allocation3 [shape = 'f32[8,32]{1,0:T(8,128)}', space=vmem, size = 0x1000, scoped, tag = 'scratch operand']
  %s0 = inlined_call_operand.hbm [shape: f32[16,32], index: 0, kind: input, shape index: {}]
  %s1 = inlined_call_operand.hbm [shape: bf16[32,96], index: 1, kind: input, shape index: {}]
  %s2 = inlined_call_operand.hbm [shape: bf16[32,32], index: 2, kind: input, shape index: {}]
  %s3 = inlined_call_operand.vmem [shape: f32[1,32], index: 3, kind: input, shape index: {}]
  %s4 = inlined_call_operand.hbm [shape: f32[16,32], index: 4, kind: output, shape index: {}]
  %s5 = sld [smem:[#allocation0]]
  $region61: #{tpu_custom_call.1} parent=0
    _
  %s7 = ssub.s32 1, %s5
  %s8 = scalar_select 0, %s7, %s5
  $region1: #{tpu_custom_call.1} parent=0
    #allocation4 [shape = 'u8[8192]{0}', space=vmem, size = 0x2000, scoped, tag = 'input window, operand 0']
    #allocation5 [shape = 's32[2]{0}', space=sflag, size = 0x8, scoped, tag = 'scoped memory for tpu_custom_call.1']
    #allocation6 [shape = 's32[2]{0}', space=sflag, size = 0x8, scoped, tag = 'scoped memory for tpu_custom_call.1']
    #allocation7 [shape = 'u8[8192]{0}', space=vmem, size = 0x2000, scoped, tag = 'input window, operand 1, single buffered']
    #allocation8 [shape = 's32[1]{0}', space=sflag, size = 0x4, scoped, tag = 'scoped memory for tpu_custom_call.1']
    #allocation9 [shape = 'u8[8192]{0}', space=vmem, size = 0x2000, scoped, tag = 'input window, operand 2, single buffered']
    #allocation10 [shape = 'u8[8192]{0}', space=vmem, size = 0x2000, scoped, tag = 'output window, operand 0']
    %9 = vsyncpa [#allocation5], 0
    %s10 = scalar_lea.sflag [#allocation5], 1
    %11 = vsyncpa %s10, 0
    %12 = vsyncpa [#allocation8], 0
    %13 = vsyncpa [#allocation6], 0
    %s14 = scalar_lea.sflag [#allocation6], 1
    %15 = vsyncpa %s14, 0
    loop: start=0, step=1, limit=4
    $region2: #{tpu_custom_call.1} parent=1 // loop_pre_header
      _
    $region3: #{tpu_custom_call.1} parent=1 // loop_header
      %s17 = sphi 0, %s21
      %p18 = scmp.ge.s32.totalorder %s17, 4
      %s27 = sphi 0, %s29
      %s30 = sphi 0, %s27
      %s31 = sphi 0, %s30
      %s47 = sphi 0, %s31
      %s51 = sphi 0, %s51
      %s53 = sphi 0, %s51
      %s54 = sphi 0, %s53
      %s68 = sphi 0, %s54
      %s72 = sphi 0, %s72
      %s74 = sphi 0, %s72
      %s75 = sphi 0, %s74
      %s89 = sphi 0, %s75
      %s93 = sphi 0, %s93
      %s95 = sphi 0, %s93
      %s96 = sphi 0, %s95
      %s110 = sphi 0, %s96
      %s116 = sphi 0, %s118
      %s119 = sphi 0, %s116
      %s120 = sphi 0, %s119
      %s136 = sphi 0, %s120
    $region4: #{tpu_custom_call.1} parent=1 // loop_header_branch
      %20 = sbr.rel (%p18) target = $region8
    $region5: #{tpu_custom_call.1} parent=1 // loop_body
      %s22 = ssub.s32 %s17, 1
      %s23 = ssub.s32 %s17, 2
      %s24 = sadd.s32 %s17, 1
      %s25 = ssub.s32 %s17, %s24
      %p26 = scmp.eq.s32.totalorder %s25, 0
      %s28 = sadd.s32 %s27, 1
      %s29 = scalar_select %p26, %s27, %s28
      %p32 = pneg %p26
      %p33 = scmp.eq.s32.totalorder %s17, 1
      %p34 = por %p32, %p33
      %p35 = scmp.ne.s32.totalorder %s27, %s30
      %p36 = scmp.eq.s32.totalorder %s17, 0
      %p37 = por %p35, %p36
      %p38 = scmp.ne.s32.totalorder %s27, %s30
      %p39 = scmp.eq.s32.totalorder %s22, 1
      %p40 = por %p38, %p39
      %p41 = scmp.ne.s32.totalorder %s30, %s31
      %p42 = scmp.eq.s32.totalorder %s22, 0
      %p43 = por %p41, %p42
      %p44 = scmp.ne.s32.totalorder %s30, %s31
      %p45 = scmp.eq.s32.totalorder %s23, 1
      %p46 = por %p44, %p45
      %p48 = scmp.ne.s32.totalorder %s31, %s47
      %p49 = scmp.eq.s32.totalorder %s23, 0
      %p50 = por %p48, %p49
      %s52 = sadd.s32 %s51, 1
      %p55 = scmp.eq.s32.totalorder %s17, 1
      %p56 = scmp.ne.s32.totalorder %s51, %s53
      %p57 = scmp.eq.s32.totalorder %s17, 0
      %p58 = por %p56, %p57
      %p59 = scmp.ne.s32.totalorder %s51, %s53
      %p60 = scmp.eq.s32.totalorder %s22, 1
      %p61 = por %p59, %p60
      %p62 = scmp.ne.s32.totalorder %s53, %s54
      %p63 = scmp.eq.s32.totalorder %s22, 0
      %p64 = por %p62, %p63
      %p65 = scmp.ne.s32.totalorder %s53, %s54
      %p66 = scmp.eq.s32.totalorder %s23, 1
      %p67 = por %p65, %p66
      %p69 = scmp.ne.s32.totalorder %s54, %s68
      %p70 = scmp.eq.s32.totalorder %s23, 0
      %p71 = por %p69, %p70
      %s73 = sadd.s32 %s72, 1
      %p76 = scmp.eq.s32.totalorder %s17, 1
      %p77 = scmp.ne.s32.totalorder %s72, %s74
      %p78 = scmp.eq.s32.totalorder %s17, 0
      %p79 = por %p77, %p78
      %p80 = scmp.ne.s32.totalorder %s72, %s74
      %p81 = scmp.eq.s32.totalorder %s22, 1
      %p82 = por %p80, %p81
      %p83 = scmp.ne.s32.totalorder %s74, %s75
      %p84 = scmp.eq.s32.totalorder %s22, 0
      %p85 = por %p83, %p84
      %p86 = scmp.ne.s32.totalorder %s74, %s75
      %p87 = scmp.eq.s32.totalorder %s23, 1
      %p88 = por %p86, %p87
      %p90 = scmp.ne.s32.totalorder %s75, %s89
      %p91 = scmp.eq.s32.totalorder %s23, 0
      %p92 = por %p90, %p91
      %s94 = sadd.s32 %s93, 1
      %p97 = scmp.eq.s32.totalorder %s17, 1
      %p98 = scmp.ne.s32.totalorder %s93, %s95
      %p99 = scmp.eq.s32.totalorder %s17, 0
      %p100 = por %p98, %p99
      %p101 = scmp.ne.s32.totalorder %s93, %s95
      %p102 = scmp.eq.s32.totalorder %s22, 1
      %p103 = por %p101, %p102
      %p104 = scmp.ne.s32.totalorder %s95, %s96
      %p105 = scmp.eq.s32.totalorder %s22, 0
      %p106 = por %p104, %p105
      %p107 = scmp.ne.s32.totalorder %s95, %s96
      %p108 = scmp.eq.s32.totalorder %s23, 1
      %p109 = por %p107, %p108
      %p111 = scmp.ne.s32.totalorder %s96, %s110
      %p112 = scmp.eq.s32.totalorder %s23, 0
      %p113 = por %p111, %p112
      %s114 = ssub.s32 %s17, %s24
      %p115 = scmp.eq.s32.totalorder %s114, 0
      %s117 = sadd.s32 %s116, 1
      %s118 = scalar_select %p115, %s116, %s117
      %p121 = pneg %p115
      %p122 = scmp.eq.s32.totalorder %s17, 1
      %p123 = por %p121, %p122
      %p124 = scmp.ne.s32.totalorder %s116, %s119
      %p125 = scmp.eq.s32.totalorder %s17, 0
      %p126 = por %p124, %p125
      %p127 = scmp.ne.s32.totalorder %s116, %s119
      %p128 = scmp.eq.s32.totalorder %s22, 1
      %p129 = por %p127, %p128
      %p130 = scmp.ne.s32.totalorder %s119, %s120
      %p131 = scmp.eq.s32.totalorder %s22, 0
      %p132 = por %p130, %p131
      %p133 = scmp.ne.s32.totalorder %s119, %s120
      %p134 = scmp.eq.s32.totalorder %s23, 1
      %p135 = por %p133, %p134
      %p137 = scmp.ne.s32.totalorder %s120, %s136
      %p138 = scmp.eq.s32.totalorder %s23, 0
      %p139 = por %p137, %p138
      %p140 = scmp.le.s32.totalorder 1, %s17
      %p141 = scmp.lt.s32.totalorder %s17, 3
      %p142 = pnand %p140, %p141
      %p143 = pneg %p142
      // Predicated region
      $region9: #{tpu_custom_call.1} parent=5 // pred_check
        _
      $region10: #{tpu_custom_call.1} parent=5 // pred_check_branch
        %145 = sbr.rel (%p142) target = $region12
      $region11: #{tpu_custom_call.1} parent=5 // pred_region
        %s146 = ssub.s32 %s17, 1
        // Predicated region
        $region13: #{tpu_custom_call.1} parent=11 // pred_check
          %p147 = pneg %p64
        $region14: #{tpu_custom_call.1} parent=11 // pred_check_branch
          %149 = sbr.rel (%p147) target = $region16
        $region15: #{tpu_custom_call.1} parent=11 // pred_region
          %s151 = ssub.s32 256, 256
          %152 = vsyncadd [#allocation8], %s151
          %s153 = sshll.u32 [#allocation7], 4
          %s154 = int_to_ptr.vmem [resolvable:$true] %s153
          %159 = dma.hbm_to_vmem [thread:$0]  %s1, 256, %s154, [#allocation8], 64, 64, 4
        $region16: #{tpu_custom_call.1} parent=11 // pred_fallthru
          _
        // Predicated region
        $region17: #{tpu_custom_call.1} parent=11 // pred_check
          %p160 = pneg %p85
        $region18: #{tpu_custom_call.1} parent=11 // pred_check_branch
          %162 = sbr.rel (%p160) target = $region20
        $region19: #{tpu_custom_call.1} parent=11 // pred_region
          %s164 = ssub.s32 256, 256
          %165 = vsyncadd [#allocation8], %s164
          %s166 = sshll.u32 [#allocation9], 4
          %s167 = int_to_ptr.vmem [resolvable:$true] %s166
          %172 = dma.hbm_to_vmem [thread:$0]  %s2, 256, %s167, [#allocation8], 64, 64, 4
        $region20: #{tpu_custom_call.1} parent=11 // pred_fallthru
          _
        // Predicated region
        $region21: #{tpu_custom_call.1} parent=11 // pred_check
          %p173 = pneg %p106
        $region22: #{tpu_custom_call.1} parent=11 // pred_check_branch
          %175 = sbr.rel (%p173) target = $region24
        $region23: #{tpu_custom_call.1} parent=11 // pred_region
          _
        $region24: #{tpu_custom_call.1} parent=11 // pred_fallthru
          _
      $region12: #{tpu_custom_call.1} parent=5 // pred_fallthru
        _
      %p176 = scmp.lt.s32.totalorder %s17, 2
      // Predicated region
      $region25: #{tpu_custom_call.1} parent=5 // pred_check
        %p177 = pneg %p176
      $region26: #{tpu_custom_call.1} parent=5 // pred_check_branch
        %179 = sbr.rel (%p177) target = $region28
      $region27: #{tpu_custom_call.1} parent=5 // pred_region
        // Predicated region
        $region29: #{tpu_custom_call.1} parent=27 // pred_check
          %p180 = pneg %p37
        $region30: #{tpu_custom_call.1} parent=27 // pred_check_branch
          %182 = sbr.rel (%p180) target = $region32
        $region31: #{tpu_custom_call.1} parent=27 // pred_region
          %s183 = sand.u32 %s27, 1
          %s184 = scalar_lea.sflag [#allocation5], %s183
          %s185 = sand.u32 %s27, 1
          %s186 = smul.addr %s185, 8
          %s187 = scalar_lea.vmem [#allocation4], %s186
          %s189 = ssub.s32 128, 128
          %190 = vsyncadd %s184, %s189
          %s191 = smul.addr %s17, 128
          %s192 = scalar_lea.hbm %s0, %s191
          %s194 = sshll.u32 %s187, 4
          %s195 = int_to_ptr.vmem [resolvable:$true] %s194
          %197 = dma.hbm_to_vmem [thread:$0]  %s192, 128, %s195, %s184
        $region32: #{tpu_custom_call.1} parent=27 // pred_fallthru
          _
      $region28: #{tpu_custom_call.1} parent=5 // pred_fallthru
        _
      %p198 = scmp.le.s32.totalorder 1, %s17
      %p199 = scmp.lt.s32.totalorder %s17, 3
      %p200 = pnand %p198, %p199
      %p201 = pneg %p200
      // Predicated region
      $region33: #{tpu_custom_call.1} parent=5 // pred_check
        _
      $region34: #{tpu_custom_call.1} parent=5 // pred_check_branch
        %203 = sbr.rel (%p200) target = $region36
      $region35: #{tpu_custom_call.1} parent=5 // pred_region
        %s204 = ssub.s32 %s17, 1
        %s205 = sand.u32 %s30, 1
        %s206 = scalar_lea.sflag [#allocation5], %s205
        %s207 = sand.u32 %s30, 1
        %s208 = smul.addr %s207, 8
        %s209 = scalar_lea.vmem [#allocation4], %s208
        // Predicated region
        $region37: #{tpu_custom_call.1} parent=35 // pred_check
          %p210 = pneg %p43
        $region38: #{tpu_custom_call.1} parent=35 // pred_check_branch
          %212 = sbr.rel (%p210) target = $region40
        $region39: #{tpu_custom_call.1} parent=35 // pred_region
          %213 = dma.done %s206, 128
        $region40: #{tpu_custom_call.1} parent=35 // pred_fallthru
          _
        // Predicated region
        $region41: #{tpu_custom_call.1} parent=35 // pred_check
          %p214 = pneg %p64
        $region42: #{tpu_custom_call.1} parent=35 // pred_check_branch
          %216 = sbr.rel (%p214) target = $region44
        $region43: #{tpu_custom_call.1} parent=35 // pred_region
          %217 = dma.done [#allocation8], 256
        $region44: #{tpu_custom_call.1} parent=35 // pred_fallthru
          _
        // Predicated region
        $region45: #{tpu_custom_call.1} parent=35 // pred_check
          %p218 = pneg %p85
        $region46: #{tpu_custom_call.1} parent=35 // pred_check_branch
          %220 = sbr.rel (%p218) target = $region48
        $region47: #{tpu_custom_call.1} parent=35 // pred_region
          %221 = dma.done [#allocation8], 256
        $region48: #{tpu_custom_call.1} parent=35 // pred_fallthru
          _
        %s222 = sand.u32 %s30, 1
        %s223 = scalar_lea.sflag [#allocation5], %s222
        %s224 = sand.u32 %s30, 1
        %s225 = smul.addr %s224, 8
        %s226 = scalar_lea.vmem [#allocation4], %s225
        %p227 = pneg %p43
        %p228 = pneg %p40
        %p229 = pneg %p64
        %p230 = pneg %p61
        %p231 = pneg %p85
        %p232 = pneg %p82
        %p233 = pneg %p106
        %p234 = pneg %p103
        %p235 = pneg %p132
        %p236 = pneg %p129
        %s237 = sand.u32 %s119, 1
        %s238 = scalar_lea.sflag [#allocation6], %s237
        %s239 = sand.u32 %s119, 1
        %s240 = smul.addr %s239, 8
        %s241 = scalar_lea.vmem [#allocation10], %s240
        %v243 = vld [vmem:[%s209] sm:$0xff]
        %v244 = vpack.c.bf16 %v243, %v243
        %v245 = vld [vmem:[#allocation7] sm:$0xf]
        %v246 = vld [vmem:[#allocation7 + $0x4] sm:$0xf]
        %v247 = vld [vmem:[#allocation7 + $0x8] sm:$0xf]
        %v248 = vld [vmem:[#allocation7 + $0xc] sm:$0xf]
        %v253 = vunpack.c.l.b16 %v245
        %v254 = vunpack.c.l.b16 %v246
        %v255 = vunpack.c.l.b16 %v247
        %v256 = vunpack.c.l.b16 %v248
        %v257 = vpack.c.b16 %v254, %v253
        %v258 = vpack.c.b16 %v256, %v255
        %vm261 = vcmask 261120
        %v263 = vsel %vm261, %v244, 0
        %265 = vmatprep.subr.bf16.mxu0 0
        %266 = vmatpush1.bf16.msra.mxu0 0
        %267 = vmatprep.subr.bf16.mxu0 0
        %268 = vmatpush1.bf16.msra.mxu0 0
        %269 = vmatprep.subr.bf16.mxu0 0
        %270 = vmatpush1.bf16.msra.mxu0 0
        %271 = vmatprep.subr.bf16.mxu0 0
        %272 = vmatpush1.bf16.msra.mxu0 0
        %273 = vmatprep.subr.bf16.mxu0 0
        %274 = vmatpush1.bf16.msra.mxu0 0
        %275 = vmatprep.subr.bf16.mxu0 0
        %276 = vmatpush1.bf16.msra.mxu0 0
        %277 = vmatprep.subr.bf16.mxu0 0
        %278 = vmatpush1.bf16.msra.mxu0 %v258
        %279 = vmatprep.subr.bf16.mxu0 0
        %280 = vmatpush1.bf16.msra.mxu0 %v257
        %281 = vmatprep.subr.bf16.mxu0 0
        %282 = vmatpush2.bf16.msra.mxu0 0
        %283 = vmatprep.subr.bf16.mxu0 0
        %284 = vmatpush2.bf16.msra.mxu0 0
        %285 = vmatprep.subr.bf16.mxu0 0
        %286 = vmatpush2.bf16.msra.mxu0 0
        %287 = vmatprep.subr.bf16.mxu0 0
        %288 = vmatpush2.bf16.msra.mxu0 0
        %289 = vmatprep.subr.bf16.mxu0 0
        %290 = vmatpush2.bf16.msra.mxu0 0
        %291 = vmatprep.subr.bf16.mxu0 0
        %292 = vmatpush2.bf16.msra.mxu0 0
        %293 = vmatprep.subr.bf16.mxu0 0
        %294 = vmatpush2.bf16.msra.mxu0 0
        %295 = vmatprep.subr.bf16.mxu0 0
        %296 = vmatpush2.bf16.msra.mxu0 0
        %297 = vmatprep.mubr.bf16.mxu0 0
        %298 = vmatmul.mubr.bf16.gmra.mxu0 %v263
        %v299 = vpop.f32.mrf.mxu0
        %v300 = vadd.f32 0.0, %v299
        %v301 = vpop.f32.mrf.mxu0
        %v302 = vpop.f32.mrf.mxu0
        %v303 = vpop.f32.mrf.mxu0
        %304 = vdwg.mxu0
        %vm305 = vcmask 785408
        %306 = vst.msk [vmem:[#allocation2] sm:$0xff] %vm305, %v300
        %v307 = vlaneseq
        %v308 = vshrl.u32 %v307, 7
        %v309 = vlaneseq
        %v310 = vand.u32 %v309, 127
        %vm311 = vcmp.gt.s32.totalorder %v310, %v308
        %v312 = vsel %vm311, -1e+30, 0.0
        %v313 = vld [vmem:[#allocation2] sm:$0xff]
        %v314 = vmul.f32 %v313, 2.828427
        %v315 = vpack.c.bf16 %v314, %v314
        %v316 = vpack.c.bf16 %v313, %v313
        %318 = vrot.lane.b32.xlu0 %v316, 96
        %v319 = vpop.permute.xlu0 %318
        %vm320 = vcmask 64512
        %v322 = vsel %vm320, %v315, 0
        %v325 = vsel %vm320, %v319, 0
        %327 = vmatprep.subr.bf16.mxu0 0
        %328 = vmatpush1.bf16.xpose.msra.mxu0 0
        %329 = vmatprep.subr.bf16.mxu0 0
        %330 = vmatpush1.bf16.xpose.msra.mxu0 0
        %331 = vmatprep.subr.bf16.mxu0 0
        %332 = vmatpush1.bf16.xpose.msra.mxu0 0
        %333 = vmatprep.subr.bf16.mxu0 0
        %334 = vmatpush1.bf16.xpose.msra.mxu0 0
        %335 = vmatprep.subr.bf16.mxu0 0
        %336 = vmatpush1.bf16.xpose.msra.mxu0 0
        %337 = vmatprep.subr.bf16.mxu0 0
        %338 = vmatpush1.bf16.xpose.msra.mxu0 0
        %339 = vmatprep.subr.bf16.mxu0 0
        %340 = vmatpush1.bf16.xpose.msra.mxu0 0
        %341 = vmatprep.subr.bf16.mxu0 0
        %342 = vmatpush1.bf16.xpose.msra.mxu0 %v325
        %343 = vmatprep.subr.bf16.mxu0 0
        %344 = vmatpush2.bf16.xpose.msra.mxu0 0
        %345 = vmatprep.subr.bf16.mxu0 0
        %346 = vmatpush2.bf16.xpose.msra.mxu0 0
        %347 = vmatprep.subr.bf16.mxu0 0
        %348 = vmatpush2.bf16.xpose.msra.mxu0 0
        %349 = vmatprep.subr.bf16.mxu0 0
        %350 = vmatpush2.bf16.xpose.msra.mxu0 0
        %351 = vmatprep.subr.bf16.mxu0 0
        %352 = vmatpush2.bf16.xpose.msra.mxu0 0
        %353 = vmatprep.subr.bf16.mxu0 0
        %354 = vmatpush2.bf16.xpose.msra.mxu0 0
        %355 = vmatprep.subr.bf16.mxu0 0
        %356 = vmatpush2.bf16.xpose.msra.mxu0 0
        %357 = vmatprep.subr.bf16.mxu0 0
        %358 = vmatpush2.bf16.xpose.msra.mxu0 0
        %359 = vmatprep.mubr.bf16.mxu0 0
        %360 = vmatmul.mubr.bf16.gmra.mxu0 %v322
        %v361 = vpop.f32.mrf.mxu0
        %v362 = vadd.f32 %v312, %v361
        %v363 = vpop.f32.mrf.mxu0
        %v364 = vpop.f32.mrf.mxu0
        %v365 = vpop.f32.mrf.mxu0
        %366 = vdwg.mxu0
        %v367 = vsel %vm320, %v362, -inf
        %368 = vmax.xlane.f32.xlu0 %v367
        %v369 = vpop.xlane.xlu0 %368
        %v370 = vsub.f32 %v362, %v369
        %v371 = vmul.f32 %v370, 1.442695
        %v372 = vpow.pop %v371
        %v373 = vsel %vm320, %v372, 0.0
        %374 = vadd.xlane.f32.xlu0 %v373
        %v375 = vpop.xlane.xlu0 %374
        %v376 = vpack.c.bf16 %v372, %v372
        %377 = vrot.lane.b32.xlu0 %v316, 64
        %v378 = vpop.permute.xlu0 %377
        %v380 = vsel %vm320, %v376, 0
        %vm382 = vcmask 1043456
        %v384 = vsel %vm382, %v378, 0
        %386 = vmatprep.subr.bf16.mxu0 0
        %387 = vmatpush1.bf16.msra.mxu0 0
        %388 = vmatprep.subr.bf16.mxu0 0
        %389 = vmatpush1.bf16.msra.mxu0 0
        %390 = vmatprep.subr.bf16.mxu0 0
        %391 = vmatpush1.bf16.msra.mxu0 0
        %392 = vmatprep.subr.bf16.mxu0 0
        %393 = vmatpush1.bf16.msra.mxu0 0
        %394 = vmatprep.subr.bf16.mxu0 0
        %395 = vmatpush1.bf16.msra.mxu0 0
        %396 = vmatprep.subr.bf16.mxu0 0
        %397 = vmatpush1.bf16.msra.mxu0 0
        %398 = vmatprep.subr.bf16.mxu0 0
        %399 = vmatpush1.bf16.msra.mxu0 0
        %400 = vmatprep.subr.bf16.mxu0 0
        %401 = vmatpush1.bf16.msra.mxu0 %v384
        %402 = vmatprep.subr.bf16.mxu0 0
        %403 = vmatpush2.bf16.msra.mxu0 0
        %404 = vmatprep.subr.bf16.mxu0 0
        %405 = vmatpush2.bf16.msra.mxu0 0
        %406 = vmatprep.subr.bf16.mxu0 0
        %407 = vmatpush2.bf16.msra.mxu0 0
        %408 = vmatprep.subr.bf16.mxu0 0
        %409 = vmatpush2.bf16.msra.mxu0 0
        %410 = vmatprep.subr.bf16.mxu0 0
        %411 = vmatpush2.bf16.msra.mxu0 0
        %412 = vmatprep.subr.bf16.mxu0 0
        %413 = vmatpush2.bf16.msra.mxu0 0
        %414 = vmatprep.subr.bf16.mxu0 0
        %415 = vmatpush2.bf16.msra.mxu0 0
        %416 = vmatprep.subr.bf16.mxu0 0
        %417 = vmatpush2.bf16.msra.mxu0 0
        %418 = vmatprep.mubr.bf16.mxu0 0
        %419 = vmatmul.mubr.bf16.gmra.mxu0 %v380
        %v420 = vpop.f32.mrf.mxu0
        %v421 = vadd.f32 0.0, %v420
        %v422 = vpop.f32.mrf.mxu0
        %v423 = vpop.f32.mrf.mxu0
        %v424 = vpop.f32.mrf.mxu0
        %425 = vdwg.mxu0
        %v426 = vrcp.pop %v375
        %v427 = vmul.f32 %v421, %v426
        %428 = vst.msk [vmem:[#allocation3] sm:$0xff] %vm320, %v427
        %v429 = vld [vmem:[#allocation2] sm:$0xff]
        %v430 = vmul.f32 %v429, 2.828427
        %v431 = vpack.c.bf16 %v430, %v430
        %v432 = vpack.c.bf16 %v429, %v429
        %434 = vrot.lane.b32.xlu0 %v431, 120
        %v435 = vpop.permute.xlu0 %434
        %437 = vrot.lane.b32.xlu0 %v432, 88
        %v438 = vpop.permute.xlu0 %437
        %v440 = vsel %vm320, %v435, 0
        %v443 = vsel %vm320, %v438, 0
        %445 = vmatprep.subr.bf16.mxu0 0
        %446 = vmatpush1.bf16.xpose.msra.mxu0 0
        %447 = vmatprep.subr.bf16.mxu0 0
        %448 = vmatpush1.bf16.xpose.msra.mxu0 0
        %449 = vmatprep.subr.bf16.mxu0 0
        %450 = vmatpush1.bf16.xpose.msra.mxu0 0
        %451 = vmatprep.subr.bf16.mxu0 0
        %452 = vmatpush1.bf16.xpose.msra.mxu0 0
        %453 = vmatprep.subr.bf16.mxu0 0
        %454 = vmatpush1.bf16.xpose.msra.mxu0 0
        %455 = vmatprep.subr.bf16.mxu0 0
        %456 = vmatpush1.bf16.xpose.msra.mxu0 0
        %457 = vmatprep.subr.bf16.mxu0 0
        %458 = vmatpush1.bf16.xpose.msra.mxu0 0
        %459 = vmatprep.subr.bf16.mxu0 0
        %460 = vmatpush1.bf16.xpose.msra.mxu0 %v443
        %461 = vmatprep.subr.bf16.mxu0 0
        %462 = vmatpush2.bf16.xpose.msra.mxu0 0
        %463 = vmatprep.subr.bf16.mxu0 0
        %464 = vmatpush2.bf16.xpose.msra.mxu0 0
        %465 = vmatprep.subr.bf16.mxu0 0
        %466 = vmatpush2.bf16.xpose.msra.mxu0 0
        %467 = vmatprep.subr.bf16.mxu0 0
        %468 = vmatpush2.bf16.xpose.msra.mxu0 0
        %469 = vmatprep.subr.bf16.mxu0 0
        %470 = vmatpush2.bf16.xpose.msra.mxu0 0
        %471 = vmatprep.subr.bf16.mxu0 0
        %472 = vmatpush2.bf16.xpose.msra.mxu0 0
        %473 = vmatprep.subr.bf16.mxu0 0
        %474 = vmatpush2.bf16.xpose.msra.mxu0 0
        %475 = vmatprep.subr.bf16.mxu0 0
        %476 = vmatpush2.bf16.xpose.msra.mxu0 0
        %477 = vmatprep.mubr.bf16.mxu0 0
        %478 = vmatmul.mubr.bf16.gmra.mxu0 %v440
        %v479 = vpop.f32.mrf.mxu0
        %v480 = vadd.f32 %v312, %v479
        %v481 = vpop.f32.mrf.mxu0
        %v482 = vpop.f32.mrf.mxu0
        %v483 = vpop.f32.mrf.mxu0
        %484 = vdwg.mxu0
        %v485 = vsel %vm320, %v480, -inf
        %486 = vmax.xlane.f32.xlu0 %v485
        %v487 = vpop.xlane.xlu0 %486
        %v488 = vsub.f32 %v480, %v487
        %v489 = vmul.f32 %v488, 1.442695
        %v490 = vpow.pop %v489
        %v491 = vsel %vm320, %v490, 0.0
        %492 = vadd.xlane.f32.xlu0 %v491
        %v493 = vpop.xlane.xlu0 %492
        %v494 = vpack.c.bf16 %v490, %v490
        %495 = vrot.lane.b32.xlu0 %v432, 56
        %v496 = vpop.permute.xlu0 %495
        %v498 = vsel %vm320, %v494, 0
        %v501 = vsel %vm382, %v496, 0
        %503 = vmatprep.subr.bf16.mxu0 0
        %504 = vmatpush1.bf16.msra.mxu0 0
        %505 = vmatprep.subr.bf16.mxu0 0
        %506 = vmatpush1.bf16.msra.mxu0 0
        %507 = vmatprep.subr.bf16.mxu0 0
        %508 = vmatpush1.bf16.msra.mxu0 0
        %509 = vmatprep.subr.bf16.mxu0 0
        %510 = vmatpush1.bf16.msra.mxu0 0
        %511 = vmatprep.subr.bf16.mxu0 0
        %512 = vmatpush1.bf16.msra.mxu0 0
        %513 = vmatprep.subr.bf16.mxu0 0
        %514 = vmatpush1.bf16.msra.mxu0 0
        %515 = vmatprep.subr.bf16.mxu0 0
        %516 = vmatpush1.bf16.msra.mxu0 0
        %517 = vmatprep.subr.bf16.mxu0 0
        %518 = vmatpush1.bf16.msra.mxu0 %v501
        %519 = vmatprep.subr.bf16.mxu0 0
        %520 = vmatpush2.bf16.msra.mxu0 0
        %521 = vmatprep.subr.bf16.mxu0 0
        %522 = vmatpush2.bf16.msra.mxu0 0
        %523 = vmatprep.subr.bf16.mxu0 0
        %524 = vmatpush2.bf16.msra.mxu0 0
        %525 = vmatprep.subr.bf16.mxu0 0
        %526 = vmatpush2.bf16.msra.mxu0 0
        %527 = vmatprep.subr.bf16.mxu0 0
        %528 = vmatpush2.bf16.msra.mxu0 0
        %529 = vmatprep.subr.bf16.mxu0 0
        %530 = vmatpush2.bf16.msra.mxu0 0
        %531 = vmatprep.subr.bf16.mxu0 0
        %532 = vmatpush2.bf16.msra.mxu0 0
        %533 = vmatprep.subr.bf16.mxu0 0
        %534 = vmatpush2.bf16.msra.mxu0 0
        %535 = vmatprep.mubr.bf16.mxu0 0
        %536 = vmatmul.mubr.bf16.gmra.mxu0 %v498
        %v537 = vpop.f32.mrf.mxu0
        %v538 = vadd.f32 0.0, %v537
        %v539 = vpop.f32.mrf.mxu0
        %v540 = vpop.f32.mrf.mxu0
        %v541 = vpop.f32.mrf.mxu0
        %542 = vdwg.mxu0
        %v543 = vrcp.pop %v493
        %v544 = vmul.f32 %v538, %v543
        %546 = vrot.lane.b32.xlu0 %v544, 8
        %v547 = vpop.permute.xlu0 %546
        %vm549 = vcmask 130112
        %550 = vst.msk [vmem:[#allocation3] sm:$0xff] %vm549, %v547
        %v551 = vld [vmem:[#allocation2] sm:$0xff]
        %v552 = vmul.f32 %v551, 2.828427
        %v553 = vpack.c.bf16 %v552, %v552
        %v554 = vpack.c.bf16 %v551, %v551
        %556 = vrot.lane.b32.xlu0 %v553, 112
        %v557 = vpop.permute.xlu0 %556
        %559 = vrot.lane.b32.xlu0 %v554, 80
        %v560 = vpop.permute.xlu0 %559
        %v562 = vsel %vm320, %v557, 0
        %v565 = vsel %vm320, %v560, 0
        %567 = vmatprep.subr.bf16.mxu0 0
        %568 = vmatpush1.bf16.xpose.msra.mxu0 0
        %569 = vmatprep.subr.bf16.mxu0 0
        %570 = vmatpush1.bf16.xpose.msra.mxu0 0
        %571 = vmatprep.subr.bf16.mxu0 0
        %572 = vmatpush1.bf16.xpose.msra.mxu0 0
        %573 = vmatprep.subr.bf16.mxu0 0
        %574 = vmatpush1.bf16.xpose.msra.mxu0 0
        %575 = vmatprep.subr.bf16.mxu0 0
        %576 = vmatpush1.bf16.xpose.msra.mxu0 0
        %577 = vmatprep.subr.bf16.mxu0 0
        %578 = vmatpush1.bf16.xpose.msra.mxu0 0
        %579 = vmatprep.subr.bf16.mxu0 0
        %580 = vmatpush1.bf16.xpose.msra.mxu0 0
        %581 = vmatprep.subr.bf16.mxu0 0
        %582 = vmatpush1.bf16.xpose.msra.mxu0 %v565
        %583 = vmatprep.subr.bf16.mxu0 0
        %584 = vmatpush2.bf16.xpose.msra.mxu0 0
        %585 = vmatprep.subr.bf16.mxu0 0
        %586 = vmatpush2.bf16.xpose.msra.mxu0 0
        %587 = vmatprep.subr.bf16.mxu0 0
        %588 = vmatpush2.bf16.xpose.msra.mxu0 0
        %589 = vmatprep.subr.bf16.mxu0 0
        %590 = vmatpush2.bf16.xpose.msra.mxu0 0
        %591 = vmatprep.subr.bf16.mxu0 0
        %592 = vmatpush2.bf16.xpose.msra.mxu0 0
        %593 = vmatprep.subr.bf16.mxu0 0
        %594 = vmatpush2.bf16.xpose.msra.mxu0 0
        %595 = vmatprep.subr.bf16.mxu0 0
        %596 = vmatpush2.bf16.xpose.msra.mxu0 0
        %597 = vmatprep.subr.bf16.mxu0 0
        %598 = vmatpush2.bf16.xpose.msra.mxu0 0
        %599 = vmatprep.mubr.bf16.mxu0 0
        %600 = vmatmul.mubr.bf16.gmra.mxu0 %v562
        %v601 = vpop.f32.mrf.mxu0
        %v602 = vadd.f32 %v312, %v601
        %v603 = vpop.f32.mrf.mxu0
        %v604 = vpop.f32.mrf.mxu0
        %v605 = vpop.f32.mrf.mxu0
        %606 = vdwg.mxu0
        %v607 = vsel %vm320, %v602, -inf
        %608 = vmax.xlane.f32.xlu0 %v607
        %v609 = vpop.xlane.xlu0 %608
        %v610 = vsub.f32 %v602, %v609
        %v611 = vmul.f32 %v610, 1.442695
        %v612 = vpow.pop %v611
        %v613 = vsel %vm320, %v612, 0.0
        %614 = vadd.xlane.f32.xlu0 %v613
        %v615 = vpop.xlane.xlu0 %614
        %v616 = vpack.c.bf16 %v612, %v612
        %617 = vrot.lane.b32.xlu0 %v554, 48
        %v618 = vpop.permute.xlu0 %617
        %v620 = vsel %vm320, %v616, 0
        %v623 = vsel %vm382, %v618, 0
        %625 = vmatprep.subr.bf16.mxu0 0
        %626 = vmatpush1.bf16.msra.mxu0 0
        %627 = vmatprep.subr.bf16.mxu0 0
        %628 = vmatpush1.bf16.msra.mxu0 0
        %629 = vmatprep.subr.bf16.mxu0 0
        %630 = vmatpush1.bf16.msra.mxu0 0
        %631 = vmatprep.subr.bf16.mxu0 0
        %632 = vmatpush1.bf16.msra.mxu0 0
        %633 = vmatprep.subr.bf16.mxu0 0
        %634 = vmatpush1.bf16.msra.mxu0 0
        %635 = vmatprep.subr.bf16.mxu0 0
        %636 = vmatpush1.bf16.msra.mxu0 0
        %637 = vmatprep.subr.bf16.mxu0 0
        %638 = vmatpush1.bf16.msra.mxu0 0
        %639 = vmatprep.subr.bf16.mxu0 0
        %640 = vmatpush1.bf16.msra.mxu0 %v623
        %641 = vmatprep.subr.bf16.mxu0 0
        %642 = vmatpush2.bf16.msra.mxu0 0
        %643 = vmatprep.subr.bf16.mxu0 0
        %644 = vmatpush2.bf16.msra.mxu0 0
        %645 = vmatprep.subr.bf16.mxu0 0
        %646 = vmatpush2.bf16.msra.mxu0 0
        %647 = vmatprep.subr.bf16.mxu0 0
        %648 = vmatpush2.bf16.msra.mxu0 0
        %649 = vmatprep.subr.bf16.mxu0 0
        %650 = vmatpush2.bf16.msra.mxu0 0
        %651 = vmatprep.subr.bf16.mxu0 0
        %652 = vmatpush2.bf16.msra.mxu0 0
        %653 = vmatprep.subr.bf16.mxu0 0
        %654 = vmatpush2.bf16.msra.mxu0 0
        %655 = vmatprep.subr.bf16.mxu0 0
        %656 = vmatpush2.bf16.msra.mxu0 0
        %657 = vmatprep.mubr.bf16.mxu0 0
        %658 = vmatmul.mubr.bf16.gmra.mxu0 %v620
        %v659 = vpop.f32.mrf.mxu0
        %v660 = vadd.f32 0.0, %v659
        %v661 = vpop.f32.mrf.mxu0
        %v662 = vpop.f32.mrf.mxu0
        %v663 = vpop.f32.mrf.mxu0
        %664 = vdwg.mxu0
        %v665 = vrcp.pop %v615
        %v666 = vmul.f32 %v660, %v665
        %668 = vrot.lane.b32.xlu0 %v666, 16
        %v669 = vpop.permute.xlu0 %668
        %vm671 = vcmask 195712
        %672 = vst.msk [vmem:[#allocation3] sm:$0xff] %vm671, %v669
        %v673 = vld [vmem:[#allocation2] sm:$0xff]
        %v674 = vmul.f32 %v673, 2.828427
        %v675 = vpack.c.bf16 %v674, %v674
        %v676 = vpack.c.bf16 %v673, %v673
        %678 = vrot.lane.b32.xlu0 %v675, 104
        %v679 = vpop.permute.xlu0 %678
        %681 = vrot.lane.b32.xlu0 %v676, 72
        %v682 = vpop.permute.xlu0 %681
        %v684 = vsel %vm320, %v679, 0
        %v687 = vsel %vm320, %v682, 0
        %689 = vmatprep.subr.bf16.mxu0 0
        %690 = vmatpush1.bf16.xpose.msra.mxu0 0
        %691 = vmatprep.subr.bf16.mxu0 0
        %692 = vmatpush1.bf16.xpose.msra.mxu0 0
        %693 = vmatprep.subr.bf16.mxu0 0
        %694 = vmatpush1.bf16.xpose.msra.mxu0 0
        %695 = vmatprep.subr.bf16.mxu0 0
        %696 = vmatpush1.bf16.xpose.msra.mxu0 0
        %697 = vmatprep.subr.bf16.mxu0 0
        %698 = vmatpush1.bf16.xpose.msra.mxu0 0
        %699 = vmatprep.subr.bf16.mxu0 0
        %700 = vmatpush1.bf16.xpose.msra.mxu0 0
        %701 = vmatprep.subr.bf16.mxu0 0
        %702 = vmatpush1.bf16.xpose.msra.mxu0 0
        %703 = vmatprep.subr.bf16.mxu0 0
        %704 = vmatpush1.bf16.xpose.msra.mxu0 %v687
        %705 = vmatprep.subr.bf16.mxu0 0
        %706 = vmatpush2.bf16.xpose.msra.mxu0 0
        %707 = vmatprep.subr.bf16.mxu0 0
        %708 = vmatpush2.bf16.xpose.msra.mxu0 0
        %709 = vmatprep.subr.bf16.mxu0 0
        %710 = vmatpush2.bf16.xpose.msra.mxu0 0
        %711 = vmatprep.subr.bf16.mxu0 0
        %712 = vmatpush2.bf16.xpose.msra.mxu0 0
        %713 = vmatprep.subr.bf16.mxu0 0
        %714 = vmatpush2.bf16.xpose.msra.mxu0 0
        %715 = vmatprep.subr.bf16.mxu0 0
        %716 = vmatpush2.bf16.xpose.msra.mxu0 0
        %717 = vmatprep.subr.bf16.mxu0 0
        %718 = vmatpush2.bf16.xpose.msra.mxu0 0
        %719 = vmatprep.subr.bf16.mxu0 0
        %720 = vmatpush2.bf16.xpose.msra.mxu0 0
        %721 = vmatprep.mubr.bf16.mxu0 0
        %722 = vmatmul.mubr.bf16.gmra.mxu0 %v684
        %v723 = vpop.f32.mrf.mxu0
        %v724 = vadd.f32 %v312, %v723
        %v725 = vpop.f32.mrf.mxu0
        %v726 = vpop.f32.mrf.mxu0
        %v727 = vpop.f32.mrf.mxu0
        %728 = vdwg.mxu0
        %v729 = vsel %vm320, %v724, -inf
        %730 = vmax.xlane.f32.xlu0 %v729
        %v731 = vpop.xlane.xlu0 %730
        %v732 = vsub.f32 %v724, %v731
        %v733 = vmul.f32 %v732, 1.442695
        %v734 = vpow.pop %v733
        %v735 = vsel %vm320, %v734, 0.0
        %736 = vadd.xlane.f32.xlu0 %v735
        %v737 = vpop.xlane.xlu0 %736
        %v738 = vpack.c.bf16 %v734, %v734
        %739 = vrot.lane.b32.xlu0 %v676, 40
        %v740 = vpop.permute.xlu0 %739
        %v742 = vsel %vm320, %v738, 0
        %v745 = vsel %vm382, %v740, 0
        %747 = vmatprep.subr.bf16.mxu0 0
        %748 = vmatpush1.bf16.msra.mxu0 0
        %749 = vmatprep.subr.bf16.mxu0 0
        %750 = vmatpush1.bf16.msra.mxu0 0
        %751 = vmatprep.subr.bf16.mxu0 0
        %752 = vmatpush1.bf16.msra.mxu0 0
        %753 = vmatprep.subr.bf16.mxu0 0
        %754 = vmatpush1.bf16.msra.mxu0 0
        %755 = vmatprep.subr.bf16.mxu0 0
        %756 = vmatpush1.bf16.msra.mxu0 0
        %757 = vmatprep.subr.bf16.mxu0 0
        %758 = vmatpush1.bf16.msra.mxu0 0
        %759 = vmatprep.subr.bf16.mxu0 0
        %760 = vmatpush1.bf16.msra.mxu0 0
        %761 = vmatprep.subr.bf16.mxu0 0
        %762 = vmatpush1.bf16.msra.mxu0 %v745
        %763 = vmatprep.subr.bf16.mxu0 0
        %764 = vmatpush2.bf16.msra.mxu0 0
        %765 = vmatprep.subr.bf16.mxu0 0
        %766 = vmatpush2.bf16.msra.mxu0 0
        %767 = vmatprep.subr.bf16.mxu0 0
        %768 = vmatpush2.bf16.msra.mxu0 0
        %769 = vmatprep.subr.bf16.mxu0 0
        %770 = vmatpush2.bf16.msra.mxu0 0
        %771 = vmatprep.subr.bf16.mxu0 0
        %772 = vmatpush2.bf16.msra.mxu0 0
        %773 = vmatprep.subr.bf16.mxu0 0
        %774 = vmatpush2.bf16.msra.mxu0 0
        %775 = vmatprep.subr.bf16.mxu0 0
        %776 = vmatpush2.bf16.msra.mxu0 0
        %777 = vmatprep.subr.bf16.mxu0 0
        %778 = vmatpush2.bf16.msra.mxu0 0
        %779 = vmatprep.mubr.bf16.mxu0 0
        %780 = vmatmul.mubr.bf16.gmra.mxu0 %v742
        %v781 = vpop.f32.mrf.mxu0
        %v782 = vadd.f32 0.0, %v781
        %v783 = vpop.f32.mrf.mxu0
        %v784 = vpop.f32.mrf.mxu0
        %v785 = vpop.f32.mrf.mxu0
        %786 = vdwg.mxu0
        %v787 = vrcp.pop %v737
        %v788 = vmul.f32 %v782, %v787
        %790 = vrot.lane.b32.xlu0 %v788, 24
        %v791 = vpop.permute.xlu0 %790
        %vm793 = vcmask 261312
        %794 = vst.msk [vmem:[#allocation3] sm:$0xff] %vm793, %v791
        %v795 = vld [vmem:[#allocation3] sm:$0xff]
        %v796 = vpack.c.bf16 %v795, %v795
        %v797 = vld [vmem:[#allocation9] sm:$0xf]
        %v798 = vld [vmem:[#allocation9 + $0x4] sm:$0xf]
        %v799 = vld [vmem:[#allocation9 + $0x8] sm:$0xf]
        %v800 = vld [vmem:[#allocation9 + $0xc] sm:$0xf]
        %v801 = vld [vmem:[%s3] sm:$0x1]
        %v803 = vlaneseq
        %v804 = vshrl.u32 %v803, 7
        %v805 = vsub.s32 0, %v804
        %v806 = vrot.slane %v801, %v805
        %v812 = vunpack.c.l.b16 %v797
        %v813 = vunpack.c.l.b16 %v798
        %v814 = vunpack.c.l.b16 %v799
        %v815 = vunpack.c.l.b16 %v800
        %v816 = vpack.c.b16 %v813, %v812
        %v817 = vpack.c.b16 %v815, %v814
        %v821 = vsel %vm261, %v796, 0
        %823 = vmatprep.subr.bf16.mxu0 0
        %824 = vmatpush1.bf16.msra.mxu0 0
        %825 = vmatprep.subr.bf16.mxu0 0
        %826 = vmatpush1.bf16.msra.mxu0 0
        %827 = vmatprep.subr.bf16.mxu0 0
        %828 = vmatpush1.bf16.msra.mxu0 0
        %829 = vmatprep.subr.bf16.mxu0 0
        %830 = vmatpush1.bf16.msra.mxu0 0
        %831 = vmatprep.subr.bf16.mxu0 0
        %832 = vmatpush1.bf16.msra.mxu0 0
        %833 = vmatprep.subr.bf16.mxu0 0
        %834 = vmatpush1.bf16.msra.mxu0 0
        %835 = vmatprep.subr.bf16.mxu0 0
        %836 = vmatpush1.bf16.msra.mxu0 %v817
        %837 = vmatprep.subr.bf16.mxu0 0
        %838 = vmatpush1.bf16.msra.mxu0 %v816
        %839 = vmatprep.subr.bf16.mxu0 0
        %840 = vmatpush2.bf16.msra.mxu0 0
        %841 = vmatprep.subr.bf16.mxu0 0
        %842 = vmatpush2.bf16.msra.mxu0 0
        %843 = vmatprep.subr.bf16.mxu0 0
        %844 = vmatpush2.bf16.msra.mxu0 0
        %845 = vmatprep.subr.bf16.mxu0 0
        %846 = vmatpush2.bf16.msra.mxu0 0
        %847 = vmatprep.subr.bf16.mxu0 0
        %848 = vmatpush2.bf16.msra.mxu0 0
        %849 = vmatprep.subr.bf16.mxu0 0
        %850 = vmatpush2.bf16.msra.mxu0 0
        %851 = vmatprep.subr.bf16.mxu0 0
        %852 = vmatpush2.bf16.msra.mxu0 0
        %853 = vmatprep.subr.bf16.mxu0 0
        %854 = vmatpush2.bf16.msra.mxu0 0
        %855 = vmatprep.mubr.bf16.mxu0 0
        %856 = vmatmul.mubr.bf16.gmra.mxu0 %v821
        %v857 = vpop.f32.mrf.mxu0
        %v858 = vadd.f32 %v806, %v857
        %v859 = vpop.f32.mrf.mxu0
        %v860 = vpop.f32.mrf.mxu0
        %v861 = vpop.f32.mrf.mxu0
        %862 = vdwg.mxu0
        %863 = vst.msk [vmem:[%s241] sm:$0xff] %vm261, %v858
        %s864 = sand.u32 %s119, 1
        %s865 = scalar_lea.sflag [#allocation6], %s864
        %s866 = sand.u32 %s119, 1
        %s867 = smul.addr %s866, 8
        %s868 = scalar_lea.vmem [#allocation10], %s867
        // Predicated region
        $region49: #{tpu_custom_call.1} parent=35 // pred_check
          %p869 = pneg %p129
        $region50: #{tpu_custom_call.1} parent=35 // pred_check_branch
          %871 = sbr.rel (%p869) target = $region52
        $region51: #{tpu_custom_call.1} parent=35 // pred_region
          %s873 = ssub.s32 128, 128
          %874 = vsyncadd %s865, %s873
          %s875 = smul.addr %s22, 128
          %s876 = scalar_lea.hbm %s4, %s875
          %s878 = sshll.u32 %s868, 4
          %s879 = int_to_ptr.vmem [resolvable:$true] %s878
          %881 = dma.vmem_to_hbm [thread:$0]  %s879, 128, %s876, %s865
        $region52: #{tpu_custom_call.1} parent=35 // pred_fallthru
          _
      $region36: #{tpu_custom_call.1} parent=5 // pred_fallthru
        _
      %p882 = scmp.le.s32.totalorder 2, %s17
      // Predicated region
      $region53: #{tpu_custom_call.1} parent=5 // pred_check
        %p883 = pneg %p882
      $region54: #{tpu_custom_call.1} parent=5 // pred_check_branch
        %885 = sbr.rel (%p883) target = $region56
      $region55: #{tpu_custom_call.1} parent=5 // pred_region
        %s886 = ssub.s32 %s17, 2
        // Predicated region
        $region57: #{tpu_custom_call.1} parent=55 // pred_check
          %p887 = pneg %p135
        $region58: #{tpu_custom_call.1} parent=55 // pred_check_branch
          %889 = sbr.rel (%p887) target = $region60
        $region59: #{tpu_custom_call.1} parent=55 // pred_region
          %s890 = sand.u32 %s120, 1
          %s891 = scalar_lea.sflag [#allocation6], %s890
          %s892 = sand.u32 %s120, 1
          %s893 = smul.addr %s892, 8
          %s894 = scalar_lea.vmem [#allocation10], %s893
          %895 = dma.done %s891, 128
        $region60: #{tpu_custom_call.1} parent=55 // pred_fallthru
          _
      $region56: #{tpu_custom_call.1} parent=5 // pred_fallthru
        _
    $region6: #{tpu_custom_call.1} parent=1 // loop_footer
      %s21 = sadd.s32 1, %s17
    $region7: #{tpu_custom_call.1} parent=1 // loop_footer_branch
      %16 = sbr.rel target = $region3
    $region8: #{tpu_custom_call.1} parent=1 // loop_exit
      _
    %896 = vsyncpa [#allocation5], 1
    %s897 = scalar_lea.sflag [#allocation5], 1
    %898 = vsyncpa %s897, 1
    %899 = vsyncpa [#allocation8], 1
    %900 = vsyncpa [#allocation6], 1
    %s901 = scalar_lea.sflag [#allocation6], 1
    %902 = vsyncpa %s901, 1

// kernel: tpu_custom_call.1
$region0: #{tpu_custom_call.1}
  #allocation0 [shape = 'u32[]', space=smem, size = 0x4, offset = 0x4, fixed_abs, tag = 'smem constant byte address 0x4 - core index']
  #allocation1 [shape = 'u32[144,128]{1,0:T(1,128)}', space=vmem, size = 0x12000, scoped, tag = 'internal scratch']
  #allocation2 [shape = 'f32[8,96]{1,0:T(8,128)}', space=vmem, size = 0x1000, scoped, tag = 'scratch operand']
  #allocation3 [shape = 'f32[8,32]{1,0:T(8,128)}', space=vmem, size = 0x1000, scoped, tag = 'scratch operand']
  %s0 = inlined_call_operand.hbm [shape: f32[16,32], index: 0, kind: input, shape index: {}]
  %s1 = inlined_call_operand.hbm [shape: bf16[32,96], index: 1, kind: input, shape index: {}]
  %s2 = inlined_call_operand.hbm [shape: bf16[32,32], index: 2, kind: input, shape index: {}]
  %s3 = inlined_call_operand.vmem [shape: f32[1,32], index: 3, kind: input, shape index: {}]
  %s4 = inlined_call_operand.hbm [shape: f32[16,32], index: 4, kind: output, shape index: {}]
  %s5 = sld [smem:[#allocation0]]
  $region61: #{tpu_custom_call.1} parent=0
    _
  %s7 = ssub.s32 1, %s5
  %s8 = scalar_select 0, %s7, %s5
  $region1: #{tpu_custom_call.1} parent=0
    #allocation4 [shape = 'u8[8192]{0}', space=vmem, size = 0x2000, scoped, tag = 'input window, operand 0']
    #allocation5 [shape = 's32[2]{0}', space=sflag, size = 0x8, scoped, tag = 'scoped memory for tpu_custom_call.1']
    #allocation6 [shape = 's32[2]{0}', space=sflag, size = 0x8, scoped, tag = 'scoped memory for tpu_custom_call.1']
    #allocation7 [shape = 'u8[8192]{0}', space=vmem, size = 0x2000, scoped, tag = 'input window, operand 1, single buffered']
    #allocation8 [shape = 's32[1]{0}', space=sflag, size = 0x4, scoped, tag = 'scoped memory for tpu_custom_call.1']
    #allocation9 [shape = 'u8[8192]{0}', space=vmem, size = 0x2000, scoped, tag = 'input window, operand 2, single buffered']
    #allocation10 [shape = 'u8[8192]{0}', space=vmem, size = 0x2000, scoped, tag = 'output window, operand 0']
    %9 = vsyncpa [#allocation5], 0
    %s10 = scalar_lea.sflag [#allocation5], 1
    %11 = vsyncpa %s10, 0
    %12 = vsyncpa [#allocation8], 0
    %13 = vsyncpa [#allocation6], 0
    %s14 = scalar_lea.sflag [#allocation6], 1
    %15 = vsyncpa %s14, 0
    loop: start=0, step=1, limit=4
    $region2: #{tpu_custom_call.1} parent=1 // loop_pre_header
      _
    $region3: #{tpu_custom_call.1} parent=1 // loop_header
      %s17 = sphi 0, %s21
      %p18 = scmp.ge.s32.totalorder %s17, 4
      %s27 = sphi 0, %s29
      %s30 = sphi 0, %s27
      %s31 = sphi 0, %s30
      %s47 = sphi 0, %s31
      %s51 = sphi 0, %s51
      %s53 = sphi 0, %s51
      %s54 = sphi 0, %s53
      %s68 = sphi 0, %s54
      %s72 = sphi 0, %s72
      %s74 = sphi 0, %s72
      %s75 = sphi 0, %s74
      %s89 = sphi 0, %s75
      %s93 = sphi 0, %s93
      %s95 = sphi 0, %s93
      %s96 = sphi 0, %s95
      %s110 = sphi 0, %s96
      %s116 = sphi 0, %s118
      %s119 = sphi 0, %s116
      %s120 = sphi 0, %s119
      %s136 = sphi 0, %s120
    $region4: #{tpu_custom_call.1} parent=1 // loop_header_branch
      %20 = sbr.rel (%p18) target = $region8
    $region5: #{tpu_custom_call.1} parent=1 // loop_body
      %s22 = ssub.s32 %s17, 1
      %s23 = ssub.s32 %s17, 2
      %s24 = sadd.s32 %s17, 1
      %s25 = ssub.s32 %s17, %s24
      %p26 = scmp.eq.s32.totalorder %s25, 0
      %s28 = sadd.s32 %s27, 1
      %s29 = scalar_select %p26, %s27, %s28
      %p32 = pneg %p26
      %p33 = scmp.eq.s32.totalorder %s17, 1
      %p34 = por %p32, %p33
      %p35 = scmp.ne.s32.totalorder %s27, %s30
      %p36 = scmp.eq.s32.totalorder %s17, 0
      %p37 = por %p35, %p36
      %p38 = scmp.ne.s32.totalorder %s27, %s30
      %p39 = scmp.eq.s32.totalorder %s22, 1
      %p40 = por %p38, %p39
      %p41 = scmp.ne.s32.totalorder %s30, %s31
      %p42 = scmp.eq.s32.totalorder %s22, 0
      %p43 = por %p41, %p42
      %p44 = scmp.ne.s32.totalorder %s30, %s31
      %p45 = scmp.eq.s32.totalorder %s23, 1
      %p46 = por %p44, %p45
      %p48 = scmp.ne.s32.totalorder %s31, %s47
      %p49 = scmp.eq.s32.totalorder %s23, 0
      %p50 = por %p48, %p49
      %s52 = sadd.s32 %s51, 1
      %p55 = scmp.eq.s32.totalorder %s17, 1
      %p56 = scmp.ne.s32.totalorder %s51, %s53
      %p57 = scmp.eq.s32.totalorder %s17, 0
      %p58 = por %p56, %p57
      %p59 = scmp.ne.s32.totalorder %s51, %s53
      %p60 = scmp.eq.s32.totalorder %s22, 1
      %p61 = por %p59, %p60
      %p62 = scmp.ne.s32.totalorder %s53, %s54
      %p63 = scmp.eq.s32.totalorder %s22, 0
      %p64 = por %p62, %p63
      %p65 = scmp.ne.s32.totalorder %s53, %s54
      %p66 = scmp.eq.s32.totalorder %s23, 1
      %p67 = por %p65, %p66
      %p69 = scmp.ne.s32.totalorder %s54, %s68
      %p70 = scmp.eq.s32.totalorder %s23, 0
      %p71 = por %p69, %p70
      %s73 = sadd.s32 %s72, 1
      %p76 = scmp.eq.s32.totalorder %s17, 1
      %p77 = scmp.ne.s32.totalorder %s72, %s74
      %p78 = scmp.eq.s32.totalorder %s17, 0
      %p79 = por %p77, %p78
      %p80 = scmp.ne.s32.totalorder %s72, %s74
      %p81 = scmp.eq.s32.totalorder %s22, 1
      %p82 = por %p80, %p81
      %p83 = scmp.ne.s32.totalorder %s74, %s75
      %p84 = scmp.eq.s32.totalorder %s22, 0
      %p85 = por %p83, %p84
      %p86 = scmp.ne.s32.totalorder %s74, %s75
      %p87 = scmp.eq.s32.totalorder %s23, 1
      %p88 = por %p86, %p87
      %p90 = scmp.ne.s32.totalorder %s75, %s89
      %p91 = scmp.eq.s32.totalorder %s23, 0
      %p92 = por %p90, %p91
      %s94 = sadd.s32 %s93, 1
      %p97 = scmp.eq.s32.totalorder %s17, 1
      %p98 = scmp.ne.s32.totalorder %s93, %s95
      %p99 = scmp.eq.s32.totalorder %s17, 0
      %p100 = por %p98, %p99
      %p101 = scmp.ne.s32.totalorder %s93, %s95
      %p102 = scmp.eq.s32.totalorder %s22, 1
      %p103 = por %p101, %p102
      %p104 = scmp.ne.s32.totalorder %s95, %s96
      %p105 = scmp.eq.s32.totalorder %s22, 0
      %p106 = por %p104, %p105
      %p107 = scmp.ne.s32.totalorder %s95, %s96
      %p108 = scmp.eq.s32.totalorder %s23, 1
      %p109 = por %p107, %p108
      %p111 = scmp.ne.s32.totalorder %s96, %s110
      %p112 = scmp.eq.s32.totalorder %s23, 0
      %p113 = por %p111, %p112
      %s114 = ssub.s32 %s17, %s24
      %p115 = scmp.eq.s32.totalorder %s114, 0
      %s117 = sadd.s32 %s116, 1
      %s118 = scalar_select %p115, %s116, %s117
      %p121 = pneg %p115
      %p122 = scmp.eq.s32.totalorder %s17, 1
      %p123 = por %p121, %p122
      %p124 = scmp.ne.s32.totalorder %s116, %s119
      %p125 = scmp.eq.s32.totalorder %s17, 0
      %p126 = por %p124, %p125
      %p127 = scmp.ne.s32.totalorder %s116, %s119
      %p128 = scmp.eq.s32.totalorder %s22, 1
      %p129 = por %p127, %p128
      %p130 = scmp.ne.s32.totalorder %s119, %s120
      %p131 = scmp.eq.s32.totalorder %s22, 0
      %p132 = por %p130, %p131
      %p133 = scmp.ne.s32.totalorder %s119, %s120
      %p134 = scmp.eq.s32.totalorder %s23, 1
      %p135 = por %p133, %p134
      %p137 = scmp.ne.s32.totalorder %s120, %s136
      %p138 = scmp.eq.s32.totalorder %s23, 0
      %p139 = por %p137, %p138
      %p140 = scmp.le.s32.totalorder 1, %s17
      %p141 = scmp.lt.s32.totalorder %s17, 3
      %p142 = pnand %p140, %p141
      %p143 = pneg %p142
      // Predicated region
      $region9: #{tpu_custom_call.1} parent=5 // pred_check
        _
      $region10: #{tpu_custom_call.1} parent=5 // pred_check_branch
        %145 = sbr.rel (%p142) target = $region12
      $region11: #{tpu_custom_call.1} parent=5 // pred_region
        %s146 = ssub.s32 %s17, 1
        // Predicated region
        $region13: #{tpu_custom_call.1} parent=11 // pred_check
          %p147 = pneg %p64
        $region14: #{tpu_custom_call.1} parent=11 // pred_check_branch
          %149 = sbr.rel (%p147) target = $region16
        $region15: #{tpu_custom_call.1} parent=11 // pred_region
          %s151 = ssub.s32 256, 256
          %152 = vsyncadd [#allocation8], %s151
          %s153 = sshll.u32 [#allocation7], 4
          %s154 = int_to_ptr.vmem [resolvable:$true] %s153
          %159 = dma.hbm_to_vmem [thread:$0]  %s1, 256, %s154, [#allocation8], 64, 64, 4
        $region16: #{tpu_custom_call.1} parent=11 // pred_fallthru
          _
        // Predicated region
        $region17: #{tpu_custom_call.1} parent=11 // pred_check
          %p160 = pneg %p85
        $region18: #{tpu_custom_call.1} parent=11 // pred_check_branch
          %162 = sbr.rel (%p160) target = $region20
        $region19: #{tpu_custom_call.1} parent=11 // pred_region
          %s164 = ssub.s32 256, 256
          %165 = vsyncadd [#allocation8], %s164
          %s166 = sshll.u32 [#allocation9], 4
          %s167 = int_to_ptr.vmem [resolvable:$true] %s166
          %172 = dma.hbm_to_vmem [thread:$0]  %s2, 256, %s167, [#allocation8], 64, 64, 4
        $region20: #{tpu_custom_call.1} parent=11 // pred_fallthru
          _
        // Predicated region
        $region21: #{tpu_custom_call.1} parent=11 // pred_check
          %p173 = pneg %p106
        $region22: #{tpu_custom_call.1} parent=11 // pred_check_branch
          %175 = sbr.rel (%p173) target = $region24
        $region23: #{tpu_custom_call.1} parent=11 // pred_region
          _
        $region24: #{tpu_custom_call.1} parent=11 // pred_fallthru
          _
      $region12: #{tpu_custom_call.1} parent=5 // pred_fallthru
        _
      %p176 = scmp.lt.s32.totalorder %s17, 2
      // Predicated region
      $region25: #{tpu_custom_call.1} parent=5 // pred_check
        %p177 = pneg %p176
      $region26: #{tpu_custom_call.1} parent=5 // pred_check_branch
        %179 = sbr.rel (%p177) target = $region28
      $region27: #{tpu_custom_call.1} parent=5 // pred_region
        // Predicated region
        $region29: #{tpu_custom_call.1} parent=27 // pred_check
          %p180 = pneg %p37
        $region30: #{tpu_custom_call.1} parent=27 // pred_check_branch
          %182 = sbr.rel (%p180) target = $region32
        $region31: #{tpu_custom_call.1} parent=27 // pred_region
          %s183 = sand.u32 %s27, 1
          %s184 = scalar_lea.sflag [#allocation5], %s183
          %s185 = sand.u32 %s27, 1
          %s186 = smul.addr %s185, 8
          %s187 = scalar_lea.vmem [#allocation4], %s186
          %s189 = ssub.s32 128, 128
          %190 = vsyncadd %s184, %s189
          %s191 = smul.addr %s17, 128
          %s192 = scalar_lea.hbm %s0, %s191
          %s194 = sshll.u32 %s187, 4
          %s195 = int_to_ptr.vmem [resolvable:$true] %s194
          %197 = dma.hbm_to_vmem [thread:$0]  %s192, 128, %s195, %s184
        $region32: #{tpu_custom_call.1} parent=27 // pred_fallthru
          _
      $region28: #{tpu_custom_call.1} parent=5 // pred_fallthru
        _
      %p198 = scmp.le.s32.totalorder 1, %s17
      %p199 = scmp.lt.s32.totalorder %s17, 3
      %p200 = pnand %p198, %p199
      %p201 = pneg %p200
      // Predicated region
      $region33: #{tpu_custom_call.1} parent=5 // pred_check
        _
      $region34: #{tpu_custom_call.1} parent=5 // pred_check_branch
        %203 = sbr.rel (%p200) target = $region36
      $region35: #{tpu_custom_call.1} parent=5 // pred_region
        %s204 = ssub.s32 %s17, 1
        %s205 = sand.u32 %s30, 1
        %s206 = scalar_lea.sflag [#allocation5], %s205
        %s207 = sand.u32 %s30, 1
        %s208 = smul.addr %s207, 8
        %s209 = scalar_lea.vmem [#allocation4], %s208
        // Predicated region
        $region37: #{tpu_custom_call.1} parent=35 // pred_check
          %p210 = pneg %p43
        $region38: #{tpu_custom_call.1} parent=35 // pred_check_branch
          %212 = sbr.rel (%p210) target = $region40
        $region39: #{tpu_custom_call.1} parent=35 // pred_region
          %213 = dma.done %s206, 128
        $region40: #{tpu_custom_call.1} parent=35 // pred_fallthru
          _
        // Predicated region
        $region41: #{tpu_custom_call.1} parent=35 // pred_check
          %p214 = pneg %p64
        $region42: #{tpu_custom_call.1} parent=35 // pred_check_branch
          %216 = sbr.rel (%p214) target = $region44
        $region43: #{tpu_custom_call.1} parent=35 // pred_region
          %217 = dma.done [#allocation8], 256
        $region44: #{tpu_custom_call.1} parent=35 // pred_fallthru
          _
        // Predicated region
        $region45: #{tpu_custom_call.1} parent=35 // pred_check
          %p218 = pneg %p85
        $region46: #{tpu_custom_call.1} parent=35 // pred_check_branch
          %220 = sbr.rel (%p218) target = $region48
        $region47: #{tpu_custom_call.1} parent=35 // pred_region
          %221 = dma.done [#allocation8], 256
        $region48: #{tpu_custom_call.1} parent=35 // pred_fallthru
          _
        %s222 = sand.u32 %s30, 1
        %s223 = scalar_lea.sflag [#allocation5], %s222
        %s224 = sand.u32 %s30, 1
        %s225 = smul.addr %s224, 8
        %s226 = scalar_lea.vmem [#allocation4], %s225
        %p227 = pneg %p43
        %p228 = pneg %p40
        %p229 = pneg %p64
        %p230 = pneg %p61
        %p231 = pneg %p85
        %p232 = pneg %p82
        %p233 = pneg %p106
        %p234 = pneg %p103
        %p235 = pneg %p132
        %p236 = pneg %p129
        %s237 = sand.u32 %s119, 1
        %s238 = scalar_lea.sflag [#allocation6], %s237
        %s239 = sand.u32 %s119, 1
        %s240 = smul.addr %s239, 8
        %s241 = scalar_lea.vmem [#allocation10], %s240
        %v243 = vld [vmem:[%s209] sm:$0xff]
        %v244 = vpack.c.bf16 %v243, %v243
        %v245 = vld [vmem:[#allocation7] sm:$0xf]
        %v246 = vld [vmem:[#allocation7 + $0x4] sm:$0xf]
        %v247 = vld [vmem:[#allocation7 + $0x8] sm:$0xf]
        %v248 = vld [vmem:[#allocation7 + $0xc] sm:$0xf]
        %v253 = vunpack.c.l.b16 %v245
        %v254 = vunpack.c.l.b16 %v246
        %v255 = vunpack.c.l.b16 %v247
        %v256 = vunpack.c.l.b16 %v248
        %v257 = vpack.c.b16 %v254, %v253
        %v258 = vpack.c.b16 %v256, %v255
        %vm261 = vcmask 261120
        %v263 = vsel %vm261, %v244, 0
        %265 = vmatprep.subr.bf16.mxu0 0
        %266 = vmatpush1.bf16.msra.mxu0 0
        %267 = vmatprep.subr.bf16.mxu0 0
        %268 = vmatpush1.bf16.msra.mxu0 0
        %269 = vmatprep.subr.bf16.mxu0 0
        %270 = vmatpush1.bf16.msra.mxu0 0
        %271 = vmatprep.subr.bf16.mxu0 0
        %272 = vmatpush1.bf16.msra.mxu0 0
        %273 = vmatprep.subr.bf16.mxu0 0
        %274 = vmatpush1.bf16.msra.mxu0 0
        %275 = vmatprep.subr.bf16.mxu0 0
        %276 = vmatpush1.bf16.msra.mxu0 0
        %277 = vmatprep.subr.bf16.mxu0 0
        %278 = vmatpush1.bf16.msra.mxu0 %v258
        %279 = vmatprep.subr.bf16.mxu0 0
        %280 = vmatpush1.bf16.msra.mxu0 %v257
        %281 = vmatprep.subr.bf16.mxu0 0
        %282 = vmatpush2.bf16.msra.mxu0 0
        %283 = vmatprep.subr.bf16.mxu0 0
        %284 = vmatpush2.bf16.msra.mxu0 0
        %285 = vmatprep.subr.bf16.mxu0 0
        %286 = vmatpush2.bf16.msra.mxu0 0
        %287 = vmatprep.subr.bf16.mxu0 0
        %288 = vmatpush2.bf16.msra.mxu0 0
        %289 = vmatprep.subr.bf16.mxu0 0
        %290 = vmatpush2.bf16.msra.mxu0 0
        %291 = vmatprep.subr.bf16.mxu0 0
        %292 = vmatpush2.bf16.msra.mxu0 0
        %293 = vmatprep.subr.bf16.mxu0 0
        %294 = vmatpush2.bf16.msra.mxu0 0
        %295 = vmatprep.subr.bf16.mxu0 0
        %296 = vmatpush2.bf16.msra.mxu0 0
        %297 = vmatprep.mubr.bf16.mxu0 0
        %298 = vmatmul.mubr.bf16.gmra.mxu0 %v263
        %v299 = vpop.f32.mrf.mxu0
        %v300 = vadd.f32 0.0, %v299
        %v301 = vpop.f32.mrf.mxu0
        %v302 = vpop.f32.mrf.mxu0
        %v303 = vpop.f32.mrf.mxu0
        %304 = vdwg.mxu0
        %vm305 = vcmask 785408
        %306 = vst.msk [vmem:[#allocation2] sm:$0xff] %vm305, %v300
        %v307 = vlaneseq
        %v308 = vshrl.u32 %v307, 7
        %v309 = vlaneseq
        %v310 = vand.u32 %v309, 127
        %vm311 = vcmp.gt.s32.totalorder %v310, %v308
        %v312 = vsel %vm311, -1e+30, 0.0
        %v313 = vld [vmem:[#allocation2] sm:$0xff]
        %v314 = vmul.f32 %v313, 2.828427
        %v315 = vpack.c.bf16 %v314, %v314
        %v316 = vpack.c.bf16 %v313, %v313
        %318 = vrot.lane.b32.xlu0 %v316, 96
        %v319 = vpop.permute.xlu0 %318
        %vm320 = vcmask 64512
        %v322 = vsel %vm320, %v315, 0
        %v325 = vsel %vm320, %v319, 0
        %327 = vmatprep.subr.bf16.mxu0 0
        %328 = vmatpush1.bf16.xpose.msra.mxu0 0
        %329 = vmatprep.subr.bf16.mxu0 0
        %330 = vmatpush1.bf16.xpose.msra.mxu0 0
        %331 = vmatprep.subr.bf16.mxu0 0
        %332 = vmatpush1.bf16.xpose.msra.mxu0 0
        %333 = vmatprep.subr.bf16.mxu0 0
        %334 = vmatpush1.bf16.xpose.msra.mxu0 0
        %335 = vmatprep.subr.bf16.mxu0 0
        %336 = vmatpush1.bf16.xpose.msra.mxu0 0
        %337 = vmatprep.subr.bf16.mxu0 0
        %338 = vmatpush1.bf16.xpose.msra.mxu0 0
        %339 = vmatprep.subr.bf16.mxu0 0
        %340 = vmatpush1.bf16.xpose.msra.mxu0 0
        %341 = vmatprep.subr.bf16.mxu0 0
        %342 = vmatpush1.bf16.xpose.msra.mxu0 %v325
        %343 = vmatprep.subr.bf16.mxu0 0
        %344 = vmatpush2.bf16.xpose.msra.mxu0 0
        %345 = vmatprep.subr.bf16.mxu0 0
        %346 = vmatpush2.bf16.xpose.msra.mxu0 0
        %347 = vmatprep.subr.bf16.mxu0 0
        %348 = vmatpush2.bf16.xpose.msra.mxu0 0
        %349 = vmatprep.subr.bf16.mxu0 0
        %350 = vmatpush2.bf16.xpose.msra.mxu0 0
        %351 = vmatprep.subr.bf16.mxu0 0
        %352 = vmatpush2.bf16.xpose.msra.mxu0 0
        %353 = vmatprep.subr.bf16.mxu0 0
        %354 = vmatpush2.bf16.xpose.msra.mxu0 0
        %355 = vmatprep.subr.bf16.mxu0 0
        %356 = vmatpush2.bf16.xpose.msra.mxu0 0
        %357 = vmatprep.subr.bf16.mxu0 0
        %358 = vmatpush2.bf16.xpose.msra.mxu0 0
        %359 = vmatprep.mubr.bf16.mxu0 0
        %360 = vmatmul.mubr.bf16.gmra.mxu0 %v322
        %v361 = vpop.f32.mrf.mxu0
        %v362 = vadd.f32 %v312, %v361
        %v363 = vpop.f32.mrf.mxu0
        %v364 = vpop.f32.mrf.mxu0
        %v365 = vpop.f32.mrf.mxu0
        %366 = vdwg.mxu0
        %v367 = vsel %vm320, %v362, -inf
        %368 = vmax.xlane.f32.xlu0 %v367
        %v369 = vpop.xlane.xlu0 %368
        %v370 = vsub.f32 %v362, %v369
        %v371 = vmul.f32 %v370, 1.442695
        %v372 = vpow.pop %v371
        %v373 = vsel %vm320, %v372, 0.0
        %374 = vadd.xlane.f32.xlu0 %v373
        %v375 = vpop.xlane.xlu0 %374
        %v376 = vpack.c.bf16 %v372, %v372
        %377 = vrot.lane.b32.xlu0 %v316, 64
        %v378 = vpop.permute.xlu0 %377
        %v380 = vsel %vm320, %v376, 0
        %vm382 = vcmask 1043456
        %v384 = vsel %vm382, %v378, 0
        %386 = vmatprep.subr.bf16.mxu0 0
        %387 = vmatpush1.bf16.msra.mxu0 0
        %388 = vmatprep.subr.bf16.mxu0 0
        %389 = vmatpush1.bf16.msra.mxu0 0
        %390 = vmatprep.subr.bf16.mxu0 0
        %391 = vmatpush1.bf16.msra.mxu0 0
        %392 = vmatprep.subr.bf16.mxu0 0
        %393 = vmatpush1.bf16.msra.mxu0 0
        %394 = vmatprep.subr.bf16.mxu0 0
        %395 = vmatpush1.bf16.msra.mxu0 0
        %396 = vmatprep.subr.bf16.mxu0 0
        %397 = vmatpush1.bf16.msra.mxu0 0
        %398 = vmatprep.subr.bf16.mxu0 0
        %399 = vmatpush1.bf16.msra.mxu0 0
        %400 = vmatprep.subr.bf16.mxu0 0
        %401 = vmatpush1.bf16.msra.mxu0 %v384
        %402 = vmatprep.subr.bf16.mxu0 0
        %403 = vmatpush2.bf16.msra.mxu0 0
        %404 = vmatprep.subr.bf16.mxu0 0
        %405 = vmatpush2.bf16.msra.mxu0 0
        %406 = vmatprep.subr.bf16.mxu0 0
        %407 = vmatpush2.bf16.msra.mxu0 0
        %408 = vmatprep.subr.bf16.mxu0 0
        %409 = vmatpush2.bf16.msra.mxu0 0
        %410 = vmatprep.subr.bf16.mxu0 0
        %411 = vmatpush2.bf16.msra.mxu0 0
        %412 = vmatprep.subr.bf16.mxu0 0
        %413 = vmatpush2.bf16.msra.mxu0 0
        %414 = vmatprep.subr.bf16.mxu0 0
        %415 = vmatpush2.bf16.msra.mxu0 0
        %416 = vmatprep.subr.bf16.mxu0 0
        %417 = vmatpush2.bf16.msra.mxu0 0
        %418 = vmatprep.mubr.bf16.mxu0 0
        %419 = vmatmul.mubr.bf16.gmra.mxu0 %v380
        %v420 = vpop.f32.mrf.mxu0
        %v421 = vadd.f32 0.0, %v420
        %v422 = vpop.f32.mrf.mxu0
        %v423 = vpop.f32.mrf.mxu0
        %v424 = vpop.f32.mrf.mxu0
        %425 = vdwg.mxu0
        %v426 = vrcp.pop %v375
        %v427 = vmul.f32 %v421, %v426
        %428 = vst.msk [vmem:[#allocation3] sm:$0xff] %vm320, %v427
        %v429 = vld [vmem:[#allocation2] sm:$0xff]
        %v430 = vmul.f32 %v429, 2.828427
        %v431 = vpack.c.bf16 %v430, %v430
        %v432 = vpack.c.bf16 %v429, %v429
        %434 = vrot.lane.b32.xlu0 %v431, 120
        %v435 = vpop.permute.xlu0 %434
        %437 = vrot.lane.b32.xlu0 %v432, 88
        %v438 = vpop.permute.xlu0 %437
        %v440 = vsel %vm320, %v435, 0
        %v443 = vsel %vm320, %v438, 0
        %445 = vmatprep.subr.bf16.mxu0 0
        %446 = vmatpush1.bf16.xpose.msra.mxu0 0
        %447 = vmatprep.subr.bf16.mxu0 0
        %448 = vmatpush1.bf16.xpose.msra.mxu0 0
        %449 = vmatprep.subr.bf16.mxu0 0
        %450 = vmatpush1.bf16.xpose.msra.mxu0 0
        %451 = vmatprep.subr.bf16.mxu0 0
        %452 = vmatpush1.bf16.xpose.msra.mxu0 0
        %453 = vmatprep.subr.bf16.mxu0 0
        %454 = vmatpush1.bf16.xpose.msra.mxu0 0
        %455 = vmatprep.subr.bf16.mxu0 0
        %456 = vmatpush1.bf16.xpose.msra.mxu0 0
        %457 = vmatprep.subr.bf16.mxu0 0
        %458 = vmatpush1.bf16.xpose.msra.mxu0 0
        %459 = vmatprep.subr.bf16.mxu0 0
        %460 = vmatpush1.bf16.xpose.msra.mxu0 %v443
        %461 = vmatprep.subr.bf16.mxu0 0
        %462 = vmatpush2.bf16.xpose.msra.mxu0 0
        %463 = vmatprep.subr.bf16.mxu0 0
        %464 = vmatpush2.bf16.xpose.msra.mxu0 0
        %465 = vmatprep.subr.bf16.mxu0 0
        %466 = vmatpush2.bf16.xpose.msra.mxu0 0
        %467 = vmatprep.subr.bf16.mxu0 0
        %468 = vmatpush2.bf16.xpose.msra.mxu0 0
        %469 = vmatprep.subr.bf16.mxu0 0
        %470 = vmatpush2.bf16.xpose.msra.mxu0 0
        %471 = vmatprep.subr.bf16.mxu0 0
        %472 = vmatpush2.bf16.xpose.msra.mxu0 0
        %473 = vmatprep.subr.bf16.mxu0 0
        %474 = vmatpush2.bf16.xpose.msra.mxu0 0
        %475 = vmatprep.subr.bf16.mxu0 0
        %476 = vmatpush2.bf16.xpose.msra.mxu0 0
        %477 = vmatprep.mubr.bf16.mxu0 0
        %478 = vmatmul.mubr.bf16.gmra.mxu0 %v440
        %v479 = vpop.f32.mrf.mxu0
        %v480 = vadd.f32 %v312, %v479
        %v481 = vpop.f32.mrf.mxu0
        %v482 = vpop.f32.mrf.mxu0
        %v483 = vpop.f32.mrf.mxu0
        %484 = vdwg.mxu0
        %v485 = vsel %vm320, %v480, -inf
        %486 = vmax.xlane.f32.xlu0 %v485
        %v487 = vpop.xlane.xlu0 %486
        %v488 = vsub.f32 %v480, %v487
        %v489 = vmul.f32 %v488, 1.442695
        %v490 = vpow.pop %v489
        %v491 = vsel %vm320, %v490, 0.0
        %492 = vadd.xlane.f32.xlu0 %v491
        %v493 = vpop.xlane.xlu0 %492
        %v494 = vpack.c.bf16 %v490, %v490
        %495 = vrot.lane.b32.xlu0 %v432, 56
        %v496 = vpop.permute.xlu0 %495
        %v498 = vsel %vm320, %v494, 0
        %v501 = vsel %vm382, %v496, 0
        %503 = vmatprep.subr.bf16.mxu0 0
        %504 = vmatpush1.bf16.msra.mxu0 0
        %505 = vmatprep.subr.bf16.mxu0 0
        %506 = vmatpush1.bf16.msra.mxu0 0
        %507 = vmatprep.subr.bf16.mxu0 0
        %508 = vmatpush1.bf16.msra.mxu0 0
        %509 = vmatprep.subr.bf16.mxu0 0
        %510 = vmatpush1.bf16.msra.mxu0 0
        %511 = vmatprep.subr.bf16.mxu0 0
        %512 = vmatpush1.bf16.msra.mxu0 0
        %513 = vmatprep.subr.bf16.mxu0 0
        %514 = vmatpush1.bf16.msra.mxu0 0
        %515 = vmatprep.subr.bf16.mxu0 0
        %516 = vmatpush1.bf16.msra.mxu0 0
        %517 = vmatprep.subr.bf16.mxu0 0
        %518 = vmatpush1.bf16.msra.mxu0 %v501
        %519 = vmatprep.subr.bf16.mxu0 0
        %520 = vmatpush2.bf16.msra.mxu0 0
        %521 = vmatprep.subr.bf16.mxu0 0
        %522 = vmatpush2.bf16.msra.mxu0 0
        %523 = vmatprep.subr.bf16.mxu0 0
        %524 = vmatpush2.bf16.msra.mxu0 0
        %525 = vmatprep.subr.bf16.mxu0 0
        %526 = vmatpush2.bf16.msra.mxu0 0
        %527 = vmatprep.subr.bf16.mxu0 0
        %528 = vmatpush2.bf16.msra.mxu0 0
        %529 = vmatprep.subr.bf16.mxu0 0
        %530 = vmatpush2.bf16.msra.mxu0 0
        %531 = vmatprep.subr.bf16.mxu0 0
        %532 = vmatpush2.bf16.msra.mxu0 0
        %533 = vmatprep.subr.bf16.mxu0 0
        %534 = vmatpush2.bf16.msra.mxu0 0
        %535 = vmatprep.mubr.bf16.mxu0 0
        %536 = vmatmul.mubr.bf16.gmra.mxu0 %v498
        %v537 = vpop.f32.mrf.mxu0
        %v538 = vadd.f32 0.0, %v537
        %v539 = vpop.f32.mrf.mxu0
        %v540 = vpop.f32.mrf.mxu0
        %v541 = vpop.f32.mrf.mxu0
        %542 = vdwg.mxu0
        %v543 = vrcp.pop %v493
        %v544 = vmul.f32 %v538, %v543
        %546 = vrot.lane.b32.xlu0 %v544, 8
        %v547 = vpop.permute.xlu0 %546
        %vm549 = vcmask 130112
        %550 = vst.msk [vmem:[#allocation3] sm:$0xff] %vm549, %v547
        %v551 = vld [vmem:[#allocation2] sm:$0xff]
        %v552 = vmul.f32 %v551, 2.828427
        %v553 = vpack.c.bf16 %v552, %v552
        %v554 = vpack.c.bf16 %v551, %v551
        %556 = vrot.lane.b32.xlu0 %v553, 112
        %v557 = vpop.permute.xlu0 %556
        %559 = vrot.lane.b32.xlu0 %v554, 80
        %v560 = vpop.permute.xlu0 %559
        %v562 = vsel %vm320, %v557, 0
        %v565 = vsel %vm320, %v560, 0
        %567 = vmatprep.subr.bf16.mxu0 0
        %568 = vmatpush1.bf16.xpose.msra.mxu0 0
        %569 = vmatprep.subr.bf16.mxu0 0
        %570 = vmatpush1.bf16.xpose.msra.mxu0 0
        %571 = vmatprep.subr.bf16.mxu0 0
        %572 = vmatpush1.bf16.xpose.msra.mxu0 0
        %573 = vmatprep.subr.bf16.mxu0 0
        %574 = vmatpush1.bf16.xpose.msra.mxu0 0
        %575 = vmatprep.subr.bf16.mxu0 0
        %576 = vmatpush1.bf16.xpose.msra.mxu0 0
        %577 = vmatprep.subr.bf16.mxu0 0
        %578 = vmatpush1.bf16.xpose.msra.mxu0 0
        %579 = vmatprep.subr.bf16.mxu0 0
        %580 = vmatpush1.bf16.xpose.msra.mxu0 0
        %581 = vmatprep.subr.bf16.mxu0 0
        %582 = vmatpush1.bf16.xpose.msra.mxu0 %v565
        %583 = vmatprep.subr.bf16.mxu0 0
        %584 = vmatpush2.bf16.xpose.msra.mxu0 0
        %585 = vmatprep.subr.bf16.mxu0 0
        %586 = vmatpush2.bf16.xpose.msra.mxu0 0
        %587 = vmatprep.subr.bf16.mxu0 0
        %588 = vmatpush2.bf16.xpose.msra.mxu0 0
        %589 = vmatprep.subr.bf16.mxu0 0
        %590 = vmatpush2.bf16.xpose.msra.mxu0 0
        %591 = vmatprep.subr.bf16.mxu0 0
        %592 = vmatpush2.bf16.xpose.msra.mxu0 0
        %593 = vmatprep.subr.bf16.mxu0 0
        %594 = vmatpush2.bf16.xpose.msra.mxu0 0
        %595 = vmatprep.subr.bf16.mxu0 0
        %596 = vmatpush2.bf16.xpose.msra.mxu0 0
        %597 = vmatprep.subr.bf16.mxu0 0
        %598 = vmatpush2.bf16.xpose.msra.mxu0 0
        %599 = vmatprep.mubr.bf16.mxu0 0
        %600 = vmatmul.mubr.bf16.gmra.mxu0 %v562
        %v601 = vpop.f32.mrf.mxu0
        %v602 = vadd.f32 %v312, %v601
        %v603 = vpop.f32.mrf.mxu0
        %v604 = vpop.f32.mrf.mxu0
        %v605 = vpop.f32.mrf.mxu0
        %606 = vdwg.mxu0
        %v607 = vsel %vm320, %v602, -inf
        %608 = vmax.xlane.f32.xlu0 %v607
        %v609 = vpop.xlane.xlu0 %608
        %v610 = vsub.f32 %v602, %v609
        %v611 = vmul.f32 %v610, 1.442695
        %v612 = vpow.pop %v611
        %v613 = vsel %vm320, %v612, 0.0
        %614 = vadd.xlane.f32.xlu0 %v613
        %v615 = vpop.xlane.xlu0 %614
        %v616 = vpack.c.bf16 %v612, %v612
        %617 = vrot.lane.b32.xlu0 %v554, 48
        %v618 = vpop.permute.xlu0 %617
        %v620 = vsel %vm320, %v616, 0
        %v623 = vsel %vm382, %v618, 0
        %625 = vmatprep.subr.bf16.mxu0 0
        %626 = vmatpush1.bf16.msra.mxu0 0
        %627 = vmatprep.subr.bf16.mxu0 0
        %628 = vmatpush1.bf16.msra.mxu0 0
        %629 = vmatprep.subr.bf16.mxu0 0
        %630 = vmatpush1.bf16.msra.mxu0 0
        %631 = vmatprep.subr.bf16.mxu0 0
        %632 = vmatpush1.bf16.msra.mxu0 0
        %633 = vmatprep.subr.bf16.mxu0 0
        %634 = vmatpush1.bf16.msra.mxu0 0
        %635 = vmatprep.subr.bf16.mxu0 0
        %636 = vmatpush1.bf16.msra.mxu0 0
        %637 = vmatprep.subr.bf16.mxu0 0
        %638 = vmatpush1.bf16.msra.mxu0 0
        %639 = vmatprep.subr.bf16.mxu0 0
        %640 = vmatpush1.bf16.msra.mxu0 %v623
        %641 = vmatprep.subr.bf16.mxu0 0
        %642 = vmatpush2.bf16.msra.mxu0 0
        %643 = vmatprep.subr.bf16.mxu0 0
        %644 = vmatpush2.bf16.msra.mxu0 0
        %645 = vmatprep.subr.bf16.mxu0 0
        %646 = vmatpush2.bf16.msra.mxu0 0
        %647 = vmatprep.subr.bf16.mxu0 0
        %648 = vmatpush2.bf16.msra.mxu0 0
        %649 = vmatprep.subr.bf16.mxu0 0
        %650 = vmatpush2.bf16.msra.mxu0 0
        %651 = vmatprep.subr.bf16.mxu0 0
        %652 = vmatpush2.bf16.msra.mxu0 0
        %653 = vmatprep.subr.bf16.mxu0 0
        %654 = vmatpush2.bf16.msra.mxu0 0
        %655 = vmatprep.subr.bf16.mxu0 0
        %656 = vmatpush2.bf16.msra.mxu0 0
        %657 = vmatprep.mubr.bf16.mxu0 0
        %658 = vmatmul.mubr.bf16.gmra.mxu0 %v620
        %v659 = vpop.f32.mrf.mxu0
        %v660 = vadd.f32 0.0, %v659
        %v661 = vpop.f32.mrf.mxu0
        %v662 = vpop.f32.mrf.mxu0
        %v663 = vpop.f32.mrf.mxu0
        %664 = vdwg.mxu0
        %v665 = vrcp.pop %v615
        %v666 = vmul.f32 %v660, %v665
        %668 = vrot.lane.b32.xlu0 %v666, 16
        %v669 = vpop.permute.xlu0 %668
        %vm671 = vcmask 195712
        %672 = vst.msk [vmem:[#allocation3] sm:$0xff] %vm671, %v669
        %v673 = vld [vmem:[#allocation2] sm:$0xff]
        %v674 = vmul.f32 %v673, 2.828427
        %v675 = vpack.c.bf16 %v674, %v674
        %v676 = vpack.c.bf16 %v673, %v673
        %678 = vrot.lane.b32.xlu0 %v675, 104
        %v679 = vpop.permute.xlu0 %678
        %681 = vrot.lane.b32.xlu0 %v676, 72
        %v682 = vpop.permute.xlu0 %681
        %v684 = vsel %vm320, %v679, 0
        %v687 = vsel %vm320, %v682, 0
        %689 = vmatprep.subr.bf16.mxu0 0
        %690 = vmatpush1.bf16.xpose.msra.mxu0 0
        %691 = vmatprep.subr.bf16.mxu0 0
        %692 = vmatpush1.bf16.xpose.msra.mxu0 0
        %693 = vmatprep.subr.bf16.mxu0 0
        %694 = vmatpush1.bf16.xpose.msra.mxu0 0
        %695 = vmatprep.subr.bf16.mxu0 0
        %696 = vmatpush1.bf16.xpose.msra.mxu0 0
        %697 = vmatprep.subr.bf16.mxu0 0
        %698 = vmatpush1.bf16.xpose.msra.mxu0 0
        %699 = vmatprep.subr.bf16.mxu0 0
        %700 = vmatpush1.bf16.xpose.msra.mxu0 0
        %701 = vmatprep.subr.bf16.mxu0 0
        %702 = vmatpush1.bf16.xpose.msra.mxu0 0
        %703 = vmatprep.subr.bf16.mxu0 0
        %704 = vmatpush1.bf16.xpose.msra.mxu0 %v687
        %705 = vmatprep.subr.bf16.mxu0 0
        %706 = vmatpush2.bf16.xpose.msra.mxu0 0
        %707 = vmatprep.subr.bf16.mxu0 0
        %708 = vmatpush2.bf16.xpose.msra.mxu0 0
        %709 = vmatprep.subr.bf16.mxu0 0
        %710 = vmatpush2.bf16.xpose.msra.mxu0 0
        %711 = vmatprep.subr.bf16.mxu0 0
        %712 = vmatpush2.bf16.xpose.msra.mxu0 0
        %713 = vmatprep.subr.bf16.mxu0 0
        %714 = vmatpush2.bf16.xpose.msra.mxu0 0
        %715 = vmatprep.subr.bf16.mxu0 0
        %716 = vmatpush2.bf16.xpose.msra.mxu0 0
        %717 = vmatprep.subr.bf16.mxu0 0
        %718 = vmatpush2.bf16.xpose.msra.mxu0 0
        %719 = vmatprep.subr.bf16.mxu0 0
        %720 = vmatpush2.bf16.xpose.msra.mxu0 0
        %721 = vmatprep.mubr.bf16.mxu0 0
        %722 = vmatmul.mubr.bf16.gmra.mxu0 %v684
        %v723 = vpop.f32.mrf.mxu0
        %v724 = vadd.f32 %v312, %v723
        %v725 = vpop.f32.mrf.mxu0
        %v726 = vpop.f32.mrf.mxu0
        %v727 = vpop.f32.mrf.mxu0
        %728 = vdwg.mxu0
        %v729 = vsel %vm320, %v724, -inf
        %730 = vmax.xlane.f32.xlu0 %v729
        %v731 = vpop.xlane.xlu0 %730
        %v732 = vsub.f32 %v724, %v731
        %v733 = vmul.f32 %v732, 1.442695
        %v734 = vpow.pop %v733
        %v735 = vsel %vm320, %v734, 0.0
        %736 = vadd.xlane.f32.xlu0 %v735
        %v737 = vpop.xlane.xlu0 %736
        %v738 = vpack.c.bf16 %v734, %v734
        %739 = vrot.lane.b32.xlu0 %v676, 40
        %v740 = vpop.permute.xlu0 %739
        %v742 = vsel %vm320, %v738, 0
        %v745 = vsel %vm382, %v740, 0
        %747 = vmatprep.subr.bf16.mxu0 0
        %748 = vmatpush1.bf16.msra.mxu0 0
        %749 = vmatprep.subr.bf16.mxu0 0
        %750 = vmatpush1.bf16.msra.mxu0 0
        %751 = vmatprep.subr.bf16.mxu0 0
        %752 = vmatpush1.bf16.msra.mxu0 0
        %753 = vmatprep.subr.bf16.mxu0 0
        %754 = vmatpush1.bf16.msra.mxu0 0
        %755 = vmatprep.subr.bf16.mxu0 0
        %756 = vmatpush1.bf16.msra.mxu0 0
        %757 = vmatprep.subr.bf16.mxu0 0
        %758 = vmatpush1.bf16.msra.mxu0 0
        %759 = vmatprep.subr.bf16.mxu0 0
        %760 = vmatpush1.bf16.msra.mxu0 0
        %761 = vmatprep.subr.bf16.mxu0 0
        %762 = vmatpush1.bf16.msra.mxu0 %v745
        %763 = vmatprep.subr.bf16.mxu0 0
        %764 = vmatpush2.bf16.msra.mxu0 0
        %765 = vmatprep.subr.bf16.mxu0 0
        %766 = vmatpush2.bf16.msra.mxu0 0
        %767 = vmatprep.subr.bf16.mxu0 0
        %768 = vmatpush2.bf16.msra.mxu0 0
        %769 = vmatprep.subr.bf16.mxu0 0
        %770 = vmatpush2.bf16.msra.mxu0 0
        %771 = vmatprep.subr.bf16.mxu0 0
        %772 = vmatpush2.bf16.msra.mxu0 0
        %773 = vmatprep.subr.bf16.mxu0 0
        %774 = vmatpush2.bf16.msra.mxu0 0
        %775 = vmatprep.subr.bf16.mxu0 0
        %776 = vmatpush2.bf16.msra.mxu0 0
        %777 = vmatprep.subr.bf16.mxu0 0
        %778 = vmatpush2.bf16.msra.mxu0 0
        %779 = vmatprep.mubr.bf16.mxu0 0
        %780 = vmatmul.mubr.bf16.gmra.mxu0 %v742
        %v781 = vpop.f32.mrf.mxu0
        %v782 = vadd.f32 0.0, %v781
        %v783 = vpop.f32.mrf.mxu0
        %v784 = vpop.f32.mrf.mxu0
        %v785 = vpop.f32.mrf.mxu0
        %786 = vdwg.mxu0
        %v787 = vrcp.pop %v737
        %v788 = vmul.f32 %v782, %v787
        %790 = vrot.lane.b32.xlu0 %v788, 24
        %v791 = vpop.permute.xlu0 %790
        %vm793 = vcmask 261312
        %794 = vst.msk [vmem:[#allocation3] sm:$0xff] %vm793, %v791
        %v795 = vld [vmem:[#allocation3] sm:$0xff]
        %v796 = vpack.c.bf16 %v795, %v795
        %v797 = vld [vmem:[#allocation9] sm:$0xf]
        %v798 = vld [vmem:[#allocation9 + $0x4] sm:$0xf]
        %v799 = vld [vmem:[#allocation9 + $0x8] sm:$0xf]
        %v800 = vld [vmem:[#allocation9 + $0xc] sm:$0xf]
        %v801 = vld [vmem:[%s3] sm:$0x1]
        %v803 = vlaneseq
        %v804 = vshrl.u32 %v803, 7
        %v805 = vsub.s32 0, %v804
        %v806 = vrot.slane %v801, %v805
        %v812 = vunpack.c.l.b16 %v797
        %v813 = vunpack.c.l.b16 %v798
        %v814 = vunpack.c.l.b16 %v799
        %v815 = vunpack.c.l.b16 %v800
        %v816 = vpack.c.b16 %v813, %v812
        %v817 = vpack.c.b16 %v815, %v814
        %v821 = vsel %vm261, %v796, 0
        %823 = vmatprep.subr.bf16.mxu0 0
        %824 = vmatpush1.bf16.msra.mxu0 0
        %825 = vmatprep.subr.bf16.mxu0 0
        %826 = vmatpush1.bf16.msra.mxu0 0
        %827 = vmatprep.subr.bf16.mxu0 0
        %828 = vmatpush1.bf16.msra.mxu0 0
        %829 = vmatprep.subr.bf16.mxu0 0
        %830 = vmatpush1.bf16.msra.mxu0 0
        %831 = vmatprep.subr.bf16.mxu0 0
        %832 = vmatpush1.bf16.msra.mxu0 0
        %833 = vmatprep.subr.bf16.mxu0 0
        %834 = vmatpush1.bf16.msra.mxu0 0
        %835 = vmatprep.subr.bf16.mxu0 0
        %836 = vmatpush1.bf16.msra.mxu0 %v817
        %837 = vmatprep.subr.bf16.mxu0 0
        %838 = vmatpush1.bf16.msra.mxu0 %v816
        %839 = vmatprep.subr.bf16.mxu0 0
        %840 = vmatpush2.bf16.msra.mxu0 0
        %841 = vmatprep.subr.bf16.mxu0 0
        %842 = vmatpush2.bf16.msra.mxu0 0
        %843 = vmatprep.subr.bf16.mxu0 0
        %844 = vmatpush2.bf16.msra.mxu0 0
        %845 = vmatprep.subr.bf16.mxu0 0
        %846 = vmatpush2.bf16.msra.mxu0 0
        %847 = vmatprep.subr.bf16.mxu0 0
        %848 = vmatpush2.bf16.msra.mxu0 0
        %849 = vmatprep.subr.bf16.mxu0 0
        %850 = vmatpush2.bf16.msra.mxu0 0
        %851 = vmatprep.subr.bf16.mxu0 0
        %852 = vmatpush2.bf16.msra.mxu0 0
        %853 = vmatprep.subr.bf16.mxu0 0
        %854 = vmatpush2.bf16.msra.mxu0 0
        %855 = vmatprep.mubr.bf16.mxu0 0
        %856 = vmatmul.mubr.bf16.gmra.mxu0 %v821
        %v857 = vpop.f32.mrf.mxu0
        %v858 = vadd.f32 %v806, %v857
        %v859 = vpop.f32.mrf.mxu0
        %v860 = vpop.f32.mrf.mxu0
        %v861 = vpop.f32.mrf.mxu0
        %862 = vdwg.mxu0
        %863 = vst.msk [vmem:[%s241] sm:$0xff] %vm261, %v858
        %s864 = sand.u32 %s119, 1
        %s865 = scalar_lea.sflag [#allocation6], %s864
        %s866 = sand.u32 %s119, 1
        %s867 = smul.addr %s866, 8
        %s868 = scalar_lea.vmem [#allocation10], %s867
        // Predicated region
        $region49: #{tpu_custom_call.1} parent=35 // pred_check
          %p869 = pneg %p129
        $region50: #{tpu_custom_call.1} parent=35 // pred_check_branch
          %871 = sbr.rel (%p869) target = $region52
        $region51: #{tpu_custom_call.1} parent=35 // pred_region
          %s873 = ssub.s32 128, 128
          %874 = vsyncadd %s865, %s873
          %s875 = smul.addr %s22, 128
          %s876 = scalar_lea.hbm %s4, %s875
          %s878 = sshll.u32 %s868, 4
          %s879 = int_to_ptr.vmem [resolvable:$true] %s878
          %881 = dma.vmem_to_hbm [thread:$0]  %s879, 128, %s876, %s865
        $region52: #{tpu_custom_call.1} parent=35 // pred_fallthru
          _
      $region36: #{tpu_custom_call.1} parent=5 // pred_fallthru
        _
      %p882 = scmp.le.s32.totalorder 2, %s17
      // Predicated region
      $region53: #{tpu_custom_call.1} parent=5 // pred_check
        %p883 = pneg %p882
      $region54: #{tpu_custom_call.1} parent=5 // pred_check_branch
        %885 = sbr.rel (%p883) target = $region56
      $region55: #{tpu_custom_call.1} parent=5 // pred_region
        %s886 = ssub.s32 %s17, 2
        // Predicated region
        $region57: #{tpu_custom_call.1} parent=55 // pred_check
          %p887 = pneg %p135
        $region58: #{tpu_custom_call.1} parent=55 // pred_check_branch
          %889 = sbr.rel (%p887) target = $region60
        $region59: #{tpu_custom_call.1} parent=55 // pred_region
          %s890 = sand.u32 %s120, 1
          %s891 = scalar_lea.sflag [#allocation6], %s890
          %s892 = sand.u32 %s120, 1
          %s893 = smul.addr %s892, 8
          %s894 = scalar_lea.vmem [#allocation10], %s893
          %895 = dma.done %s891, 128
        $region60: #{tpu_custom_call.1} parent=55 // pred_fallthru
          _
      $region56: #{tpu_custom_call.1} parent=5 // pred_fallthru
        _
    $region6: #{tpu_custom_call.1} parent=1 // loop_footer
      %s21 = sadd.s32 1, %s17
    $region7: #{tpu_custom_call.1} parent=1 // loop_footer_branch
      %16 = sbr.rel target = $region3
    $region8: #{tpu_custom_call.1} parent=1 // loop_exit
      _
    %896 = vsyncpa [#allocation5], 1
    %s897 = scalar_lea.sflag [#allocation5], 1
    %898 = vsyncpa %s897, 1
    %899 = vsyncpa [#allocation8], 1
    %900 = vsyncpa [#allocation6], 1
    %s901 = scalar_lea.sflag [#allocation6], 1
    %902 = vsyncpa %s901, 1

</llo_original>
